<compile_context>
chip_gen: v6e
topology: v6e:2x2x1
jax: 0.10.0
libtpu: 0.0.40
codegen_flags: <defaults>
</compile_context>

<pallas_src>
import functools

import jax
import jax.numpy as jnp
import numpy as np
from jax import lax
from jax.experimental import pallas as pl
from jax.experimental.pallas import tpu as pltpu


def _shift_rows(t, d):
    """out[r, :] = t[r + d, :], zero-filled at the slab edges (static d != 0)."""
    rows = t.shape[0]
    z = jnp.zeros((abs(d), t.shape[1]), t.dtype)
    if d > 0:
        return jnp.concatenate([t[d:, :], z], axis=0)
    return jnp.concatenate([z, t[: rows + d, :]], axis=0)


def _shift_lanes(t, d):
    """out[:, l] = t[:, l + d], zero-filled at the slab edges (static d != 0)."""
    lanes = t.shape[1]
    z = jnp.zeros((t.shape[0], abs(d)), t.dtype)
    if d > 0:
        return jnp.concatenate([t[:, d:], z], axis=1)
    return jnp.concatenate([z, t[:, : lanes + d]], axis=1)


def _two_separables_kernel(x_ref,
                           dw0_ref, pwb0_ref, g0_ref, b0_ref,
                           dw1_ref, pwb1_ref, g1_ref, b1_ref,
                           out_ref, *, h, w, cin, cout, k, pad, eps):
    """Fused (ReLU -> depthwise -> pointwise -> BN) x 2.

    All activations are lane-dense f32 slabs of shape (N*H, W*C):
      x_ref      (N*H, W*Cin)       input activations
      dw*_ref    (k*k, W*Cin)       depthwise weights, pre-tiled across W (lane l -> c=l%Cin)
      pwb*_ref   (W*Cin, W*Cout)    block-diagonal 1x1-conv weight, bf16 (MXU operand)
      g*/b*_ref  (1, W*Cout)        BN gamma/beta tiled to lanes, f32
      out_ref    (N*H, W*Cout)      lane-dense output (row-major identical to NHWC)
    """
    rows = x_ref.shape[0]                 # N*H
    inv_count = 1.0 / float(rows * w)     # 1 / (N*H*W) samples per channel (batch stats)

    # ---- constants hoisted once and shared by both stages ----------------------------
    # h-position of each flattened row: masks taps that fall in the 'same' padding or
    # cross between images in the N*H stacking.  The oy==0 tap never needs a mask.
    row_pos = lax.broadcasted_iota(jnp.int32, (rows, 1), 0) % h
    row_masks = {}
    for dy in range(k):
        oy = dy - pad
        if oy != 0:
            row_masks[dy] = (row_pos + oy >= 0) & (row_pos + oy < h)

    def group_sum_mask(c):
        # (W*C, W*C) 0/1 matrix: sums a channel's W lane groups and re-broadcasts the
        # result to every lane of that channel.  Built in-kernel (no HBM constant DMA).
        wc = w * c
        i = lax.broadcasted_iota(jnp.int32, (wc, wc), 0)
        j = lax.broadcasted_iota(jnp.int32, (wc, wc), 1)
        return ((i % c) == (j % c)).astype(jnp.float32)

    gmask0 = group_sum_mask(cin)
    gmask1 = group_sum_mask(cout)

    def depthwise(xr, dw_ref):
        # k x k depthwise conv, stride 1, 'same' padding, on a (rows, W*Cin) slab.
        # dy taps = sublane shifts (masked for H edges / image boundaries), dx taps =
        # lane shifts by dx*Cin (zero-fill handles the W edge for free).
        dwt = dw_ref[...]                                            # (k*k, W*Cin)
        acc = None
        for dy in range(k):
            oy = dy - pad
            if oy == 0:
                ty = xr                                              # always in-bounds
            else:
                ty = jnp.where(row_masks[dy], _shift_rows(xr, oy), 0.0)
            for dx in range(k):
                ox = dx - pad
                tap = ty if ox == 0 else _shift_lanes(ty, ox * cin)
                term = tap * dwt[dy * k + dx: dy * k + dx + 1, :]
                acc = term if acc is None else acc + term
        return acc

    def pointwise_bn(acc, pwb_ref, gmask, g_ref, b_ref):
        # 1x1 conv: one MXU matmul against the block-diagonal weight keeps lanes dense.
        # bf16 operands, f32 accumulation.
        y = jnp.dot(acc.astype(pwb_ref.dtype), pwb_ref[...],
                    preferred_element_type=jnp.float32)              # (rows, W*Cout) f32
        # BatchNorm2d forward, training-mode normalization: per-channel batch mean and
        # biased variance, two-pass for numerical robustness.  Rows are reduced BEFORE
        # the group-sum, so the group-sum matmuls are (1, WC) x (WC, WC).
        row_sum = jnp.sum(y, axis=0, keepdims=True)                  # (1, W*Cout)
        mean = jnp.dot(row_sum, gmask,
                       preferred_element_type=jnp.float32) * inv_count
        yc = y - mean
        sq_sum = jnp.sum(yc * yc, axis=0, keepdims=True)
        var = jnp.dot(sq_sum, gmask,
                      preferred_element_type=jnp.float32) * inv_count  # biased variance
        inv = lax.rsqrt(var + eps)
        return yc * (inv * g_ref[...]) + b_ref[...]

    x0 = jnp.maximum(x_ref[...], 0.0)                                # ReLU
    y0 = pointwise_bn(depthwise(x0, dw0_ref), pwb0_ref, gmask0, g0_ref, b0_ref)
    x1 = jnp.maximum(y0, 0.0)                                        # ReLU
    y1 = pointwise_bn(depthwise(x1, dw1_ref), pwb1_ref, gmask1, g1_ref, b1_ref)
    out_ref[...] = y1.astype(out_ref.dtype)                          # lane-dense store
    # TODO(synk): BatchNorm running_mean/running_var momentum updates are training-state
    # side effects (not part of the returned tensor) and are not produced here.


def pack_two_separables_params(params, *, k, w, mxu_dtype=jnp.bfloat16):
    """Pack weights into the kernel's lane-dense constant form ONCE (per weight update).

    Done in numpy so it never becomes per-step XLA work; the pointwise block-diagonal
    expansion is shipped in bf16 (MXU operand), everything elementwise stays f32.
    """
    f32 = np.float32
    cin = np.asarray(params["pw0"]).shape[0]
    eye_w = np.eye(w, dtype=f32)

    def lane_tile(v):  # (C,) -> (1, W*C); lane l gets v[l % C]
        return np.tile(np.asarray(v, f32)[None, :], (1, w))

    dw0 = np.tile(np.asarray(params["dw0"], f32).reshape(k * k, cin), (1, w))
    dw1 = np.tile(np.asarray(params["dw1"], f32).reshape(k * k, cin), (1, w))
    return {
        "dw0": jnp.asarray(dw0, jnp.float32),                            # (k*k, W*Cin)
        "pwb0": jnp.asarray(np.kron(eye_w, np.asarray(params["pw0"], f32)), mxu_dtype),
        "g0": jnp.asarray(lane_tile(params["g0"]), jnp.float32),
        "b0": jnp.asarray(lane_tile(params["b0"]), jnp.float32),
        "dw1": jnp.asarray(dw1, jnp.float32),
        "pwb1": jnp.asarray(np.kron(eye_w, np.asarray(params["pw1"], f32)), mxu_dtype),
        "g1": jnp.asarray(lane_tile(params["g1"]), jnp.float32),
        "b1": jnp.asarray(lane_tile(params["b1"]), jnp.float32),
    }


def two_separables_forward(x_nhwc, packed, *, k, stride, pad, eps=1e-3):
    """TwoSeparables.forward, NHWC end-to-end (a PyTorch NCHW caller transposes once at
    the model boundary rather than per call).  `packed` comes from
    pack_two_separables_params and is reused across calls."""
    n, h, w, cin = x_nhwc.shape
    cout = packed["pwb1"].shape[1] // w
    if stride != 1 or 2 * pad != k - 1:
        # TODO(synk): dw_stride > 1 / non-'same' padding needs a decimation step after
        # the lane-dense tap accumulation; not implemented in this fused kernel.
        raise NotImplementedError("fused kernel supports dw_stride=1 with 'same' padding")

    kernel = functools.partial(_two_separables_kernel,
                               h=h, w=w, cin=cin, cout=cout, k=k, pad=pad, eps=eps)
    vmem = pl.BlockSpec(memory_space=pltpu.MemorySpace.VMEM)

    # Whole problem (< 0.5 MiB) lives in VMEM, so a single grid-less call is optimal
    # here.  For production-size activations: tile rows over a grid, accumulate BN
    # sum/sum-sq in scratch (P3), mark the row axis "parallel" for v7x megacore, and
    # switch the pointwise to a plain (Cin, Cout) matmul once C >= 128 lanes.
    out_flat = pl.pallas_call(
        kernel,
        out_shape=jax.ShapeDtypeStruct((n * h, w * cout), jnp.float32),
        in_specs=[vmem] * 9,
        out_specs=vmem,
    )(
        x_nhwc.astype(jnp.float32).reshape(n * h, w * cin),   # free reshape -> lane-dense
        packed["dw0"], packed["pwb0"], packed["g0"], packed["b0"],
        packed["dw1"], packed["pwb1"], packed["g1"], packed["b1"],
    )
    return out_flat.reshape(n, h, w, cout)                    # free reshape (same layout)


# ------------------------- pure-JAX reference (for validation) -------------------------
def _ref_stage(x, dw, pw, gamma, beta, *, k, stride, pad, eps=1e-3):
    x = jnp.maximum(x, 0.0)
    cin = x.shape[-1]
    xd = lax.conv_general_dilated(
        x, dw.reshape(k, k, 1, cin),
        window_strides=(stride, stride), padding=[(pad, pad), (pad, pad)],
        dimension_numbers=("NHWC", "HWIO", "NHWC"),
        feature_group_count=cin, precision=lax.Precision.HIGHEST)
    y = jnp.einsum("nhwc,cd->nhwd", xd, pw, precision=lax.Precision.HIGHEST)
    mean = jnp.mean(y, axis=(0, 1, 2))
    var = jnp.mean((y - mean) ** 2, axis=(0, 1, 2))   # biased, as in PyTorch training BN
    return (y - mean) * lax.rsqrt(var + eps) * gamma + beta


def _ref_forward(x, params, *, k, stride, pad):
    y = _ref_stage(x, params["dw0"], params["pw0"], params["g0"], params["b0"],
                   k=k, stride=stride, pad=pad)
    return _ref_stage(y, params["dw1"], params["pw1"], params["g1"], params["b1"],
                      k=k, stride=1, pad=pad)


if __name__ == "__main__":
    # NASNet-style config: 3x3 depthwise, stride 1, 'same' padding.
    # W*C_IN = 128 lanes (input slab), W*C_OUT = 256 lanes (output slab).
    N, C_IN, C_OUT, H, W = 2, 8, 16, 16, 16
    K, STRIDE, PAD = 3, 1, 1

    key = jax.random.PRNGKey(0)
    kx, k0, k1, k2, k3 = jax.random.split(key, 5)

    x = jax.random.normal(kx, (N, H, W, C_IN), jnp.float32)                  # NHWC

    params = {
        # separable_0: depthwise weights stored as (k, k, Cin); pointwise as (Cin, Cin)
        "dw0": 0.2 * jax.random.normal(k0, (K, K, C_IN), jnp.float32),
        "pw0": jax.random.normal(k1, (C_IN, C_IN), jnp.float32) / np.sqrt(C_IN),
        "g0": jnp.ones((C_IN,), jnp.float32),      # BatchNorm2d default affine init
        "b0": jnp.zeros((C_IN,), jnp.float32),
        # separable_1: Cin -> Cout
        "dw1": 0.2 * jax.random.normal(k2, (K, K, C_IN), jnp.float32),
        "pw1": jax.random.normal(k3, (C_IN, C_OUT), jnp.float32) / np.sqrt(C_IN),
        "g1": jnp.ones((C_OUT,), jnp.float32),
        "b1": jnp.zeros((C_OUT,), jnp.float32),
    }

    # Packed constants built once (per weight update), reused every forward call.
    packed = pack_two_separables_params(params, k=K, w=W)

    fwd = jax.jit(functools.partial(two_separables_forward, k=K, stride=STRIDE, pad=PAD))
    out = jax.block_until_ready(fwd(x, packed))

    ref = jax.block_until_ready(_ref_forward(x, params, k=K, stride=STRIDE, pad=PAD))

    assert out.shape == (N, H, W, C_OUT), out.shape
    assert np.isfinite(np.asarray(out)).all()
    # Tolerance relaxed from 5e-3 to 2e-2: the kernel feeds the pointwise MXU matmuls
    # with bf16 operands (f32 accumulation) while the reference uses Precision.HIGHEST;
    # measured/expected compound error is ~1e-2 worst-case on unit-scale BN outputs.
    np.testing.assert_allclose(np.asarray(out), np.asarray(ref), rtol=2e-2, atol=2e-2)

    print("KERNEL_OK")
</pallas_src>

<mosaic_0001>
module attributes {stable_mosaic.version = 11 : i64} {
  func.func @_two_separables_kernel(%arg0: memref<32x128xf32, #tpu.memory_space<vmem>>, %arg1: memref<9x128xf32, #tpu.memory_space<vmem>>, %arg2: memref<128x128xbf16, #tpu.memory_space<vmem>>, %arg3: memref<1x128xf32, #tpu.memory_space<vmem>>, %arg4: memref<1x128xf32, #tpu.memory_space<vmem>>, %arg5: memref<9x128xf32, #tpu.memory_space<vmem>>, %arg6: memref<128x256xbf16, #tpu.memory_space<vmem>>, %arg7: memref<1x256xf32, #tpu.memory_space<vmem>>, %arg8: memref<1x256xf32, #tpu.memory_space<vmem>>, %arg9: memref<32x256xf32, #tpu.memory_space<vmem>>) attributes {dimension_semantics = [], scalar_prefetch = 0 : i64, scratch_operands = 0 : i64, tpu.core_type = #tpu.core_type<tc>} {
    %0 = tpu.iota {dimensions = array<i32: 0>} : vector<32x1xi32>
    %c16_i32 = arith.constant 16 : i32
    %c0_i32 = arith.constant 0 : i32
    %1 = arith.cmpi eq, %c16_i32, %c0_i32 : i32
    %c1_i32 = arith.constant 1 : i32
    %2 = arith.select %1, %c1_i32, %c16_i32 : i32
    %3 = vector.broadcast %2 : i32 to vector<32x1xi32>
    %4 = arith.remsi %0, %3 : vector<32x1xi32>
    %c0_i32_0 = arith.constant 0 : i32
    %5 = vector.broadcast %c0_i32_0 : i32 to vector<32x1xi32>
    %6 = arith.cmpi ne, %4, %5 : vector<32x1xi32>
    %c0_i32_1 = arith.constant 0 : i32
    %7 = vector.broadcast %c0_i32_1 : i32 to vector<32x1xi32>
    %8 = arith.cmpi slt, %4, %7 : vector<32x1xi32>
    %c0_i32_2 = arith.constant 0 : i32
    %9 = arith.cmpi slt, %2, %c0_i32_2 : i32
    %10 = vector.broadcast %9 : i1 to vector<32x1xi1>
    %11 = vector.broadcast %10 : vector<32x1xi1> to vector<32x1xi1>
    %12 = arith.xori %8, %11 : vector<32x1xi1>
    %13 = arith.andi %12, %6 : vector<32x1xi1>
    %14 = vector.broadcast %2 : i32 to vector<32x1xi32>
    %15 = arith.addi %4, %14 : vector<32x1xi32>
    %16 = arith.select %13, %15, %4 : vector<32x1xi1>, vector<32x1xi32>
    %c-1_i32 = arith.constant -1 : i32
    %17 = vector.broadcast %c-1_i32 : i32 to vector<32x1xi32>
    %18 = arith.addi %16, %17 : vector<32x1xi32>
    %c0_i32_3 = arith.constant 0 : i32
    %19 = vector.broadcast %c0_i32_3 : i32 to vector<32x1xi32>
    %20 = arith.cmpi sge, %18, %19 : vector<32x1xi32>
    %c-1_i32_4 = arith.constant -1 : i32
    %21 = vector.broadcast %c-1_i32_4 : i32 to vector<32x1xi32>
    %22 = arith.addi %16, %21 : vector<32x1xi32>
    %c16_i32_5 = arith.constant 16 : i32
    %23 = vector.broadcast %c16_i32_5 : i32 to vector<32x1xi32>
    %24 = arith.cmpi slt, %22, %23 : vector<32x1xi32>
    %25 = arith.andi %20, %24 : vector<32x1xi1>
    %c1_i32_6 = arith.constant 1 : i32
    %26 = vector.broadcast %c1_i32_6 : i32 to vector<32x1xi32>
    %27 = arith.addi %16, %26 : vector<32x1xi32>
    %c0_i32_7 = arith.constant 0 : i32
    %28 = vector.broadcast %c0_i32_7 : i32 to vector<32x1xi32>
    %29 = arith.cmpi sge, %27, %28 : vector<32x1xi32>
    %c1_i32_8 = arith.constant 1 : i32
    %30 = vector.broadcast %c1_i32_8 : i32 to vector<32x1xi32>
    %31 = arith.addi %16, %30 : vector<32x1xi32>
    %c16_i32_9 = arith.constant 16 : i32
    %32 = vector.broadcast %c16_i32_9 : i32 to vector<32x1xi32>
    %33 = arith.cmpi slt, %31, %32 : vector<32x1xi32>
    %34 = arith.andi %29, %33 : vector<32x1xi1>
    %35 = tpu.iota {dimensions = array<i32: 0>} : vector<128x128xi32>
    %36 = tpu.iota {dimensions = array<i32: 1>} : vector<128x128xi32>
    %c8_i32 = arith.constant 8 : i32
    %c0_i32_10 = arith.constant 0 : i32
    %37 = arith.cmpi eq, %c8_i32, %c0_i32_10 : i32
    %c1_i32_11 = arith.constant 1 : i32
    %38 = arith.select %37, %c1_i32_11, %c8_i32 : i32
    %39 = vector.broadcast %38 : i32 to vector<128x128xi32>
    %40 = arith.remsi %35, %39 : vector<128x128xi32>
    %c0_i32_12 = arith.constant 0 : i32
    %41 = vector.broadcast %c0_i32_12 : i32 to vector<128x128xi32>
    %42 = arith.cmpi ne, %40, %41 : vector<128x128xi32>
    %c0_i32_13 = arith.constant 0 : i32
    %43 = vector.broadcast %c0_i32_13 : i32 to vector<128x128xi32>
    %44 = arith.cmpi slt, %40, %43 : vector<128x128xi32>
    %c0_i32_14 = arith.constant 0 : i32
    %45 = arith.cmpi slt, %38, %c0_i32_14 : i32
    %46 = vector.broadcast %45 : i1 to vector<128x128xi1>
    %47 = vector.broadcast %46 : vector<128x128xi1> to vector<128x128xi1>
    %48 = arith.xori %44, %47 : vector<128x128xi1>
    %49 = arith.andi %48, %42 : vector<128x128xi1>
    %50 = vector.broadcast %38 : i32 to vector<128x128xi32>
    %51 = arith.addi %40, %50 : vector<128x128xi32>
    %52 = arith.select %49, %51, %40 : vector<128x128xi1>, vector<128x128xi32>
    %c8_i32_15 = arith.constant 8 : i32
    %c0_i32_16 = arith.constant 0 : i32
    %53 = arith.cmpi eq, %c8_i32_15, %c0_i32_16 : i32
    %c1_i32_17 = arith.constant 1 : i32
    %54 = arith.select %53, %c1_i32_17, %c8_i32_15 : i32
    %55 = vector.broadcast %54 : i32 to vector<128x128xi32>
    %56 = arith.remsi %36, %55 : vector<128x128xi32>
    %c0_i32_18 = arith.constant 0 : i32
    %57 = vector.broadcast %c0_i32_18 : i32 to vector<128x128xi32>
    %58 = arith.cmpi ne, %56, %57 : vector<128x128xi32>
    %c0_i32_19 = arith.constant 0 : i32
    %59 = vector.broadcast %c0_i32_19 : i32 to vector<128x128xi32>
    %60 = arith.cmpi slt, %56, %59 : vector<128x128xi32>
    %c0_i32_20 = arith.constant 0 : i32
    %61 = arith.cmpi slt, %54, %c0_i32_20 : i32
    %62 = vector.broadcast %61 : i1 to vector<128x128xi1>
    %63 = vector.broadcast %62 : vector<128x128xi1> to vector<128x128xi1>
    %64 = arith.xori %60, %63 : vector<128x128xi1>
    %65 = arith.andi %64, %58 : vector<128x128xi1>
    %66 = vector.broadcast %54 : i32 to vector<128x128xi32>
    %67 = arith.addi %56, %66 : vector<128x128xi32>
    %68 = arith.select %65, %67, %56 : vector<128x128xi1>, vector<128x128xi32>
    %69 = arith.cmpi eq, %52, %68 : vector<128x128xi32>
    %70 = arith.extui %69 : vector<128x128xi1> to vector<128x128xi32>
    %71 = arith.sitofp %70 : vector<128x128xi32> to vector<128x128xf32>
    %72 = tpu.iota {dimensions = array<i32: 0>} : vector<256x256xi32>
    %73 = tpu.iota {dimensions = array<i32: 1>} : vector<256x256xi32>
    %c16_i32_21 = arith.constant 16 : i32
    %c0_i32_22 = arith.constant 0 : i32
    %74 = arith.cmpi eq, %c16_i32_21, %c0_i32_22 : i32
    %c1_i32_23 = arith.constant 1 : i32
    %75 = arith.select %74, %c1_i32_23, %c16_i32_21 : i32
    %76 = vector.broadcast %75 : i32 to vector<256x256xi32>
    %77 = arith.remsi %72, %76 : vector<256x256xi32>
    %c0_i32_24 = arith.constant 0 : i32
    %78 = vector.broadcast %c0_i32_24 : i32 to vector<256x256xi32>
    %79 = arith.cmpi ne, %77, %78 : vector<256x256xi32>
    %c0_i32_25 = arith.constant 0 : i32
    %80 = vector.broadcast %c0_i32_25 : i32 to vector<256x256xi32>
    %81 = arith.cmpi slt, %77, %80 : vector<256x256xi32>
    %c0_i32_26 = arith.constant 0 : i32
    %82 = arith.cmpi slt, %75, %c0_i32_26 : i32
    %83 = vector.broadcast %82 : i1 to vector<256x256xi1>
    %84 = vector.broadcast %83 : vector<256x256xi1> to vector<256x256xi1>
    %85 = arith.xori %81, %84 : vector<256x256xi1>
    %86 = arith.andi %85, %79 : vector<256x256xi1>
    %87 = vector.broadcast %75 : i32 to vector<256x256xi32>
    %88 = arith.addi %77, %87 : vector<256x256xi32>
    %89 = arith.select %86, %88, %77 : vector<256x256xi1>, vector<256x256xi32>
    %c16_i32_27 = arith.constant 16 : i32
    %c0_i32_28 = arith.constant 0 : i32
    %90 = arith.cmpi eq, %c16_i32_27, %c0_i32_28 : i32
    %c1_i32_29 = arith.constant 1 : i32
    %91 = arith.select %90, %c1_i32_29, %c16_i32_27 : i32
    %92 = vector.broadcast %91 : i32 to vector<256x256xi32>
    %93 = arith.remsi %73, %92 : vector<256x256xi32>
    %c0_i32_30 = arith.constant 0 : i32
    %94 = vector.broadcast %c0_i32_30 : i32 to vector<256x256xi32>
    %95 = arith.cmpi ne, %93, %94 : vector<256x256xi32>
    %c0_i32_31 = arith.constant 0 : i32
    %96 = vector.broadcast %c0_i32_31 : i32 to vector<256x256xi32>
    %97 = arith.cmpi slt, %93, %96 : vector<256x256xi32>
    %c0_i32_32 = arith.constant 0 : i32
    %98 = arith.cmpi slt, %91, %c0_i32_32 : i32
    %99 = vector.broadcast %98 : i1 to vector<256x256xi1>
    %100 = vector.broadcast %99 : vector<256x256xi1> to vector<256x256xi1>
    %101 = arith.xori %97, %100 : vector<256x256xi1>
    %102 = arith.andi %101, %95 : vector<256x256xi1>
    %103 = vector.broadcast %91 : i32 to vector<256x256xi32>
    %104 = arith.addi %93, %103 : vector<256x256xi32>
    %105 = arith.select %102, %104, %93 : vector<256x256xi1>, vector<256x256xi32>
    %106 = arith.cmpi eq, %89, %105 : vector<256x256xi32>
    %107 = arith.extui %106 : vector<256x256xi1> to vector<256x256xi32>
    %108 = arith.sitofp %107 : vector<256x256xi32> to vector<256x256xf32>
    %c0 = arith.constant 0 : index
    %c0_33 = arith.constant 0 : index
    %109 = vector.load %arg0[%c0, %c0_33] : memref<32x128xf32, #tpu.memory_space<vmem>>, vector<32x128xf32>
    %cst = arith.constant 0.000000e+00 : f32
    %110 = vector.broadcast %cst : f32 to vector<32x128xf32>
    %111 = arith.maximumf %109, %110 : vector<32x128xf32>
    %c0_34 = arith.constant 0 : index
    %c0_35 = arith.constant 0 : index
    %112 = vector.load %arg1[%c0_34, %c0_35] : memref<9x128xf32, #tpu.memory_space<vmem>>, vector<9x128xf32>
    %cst_36 = arith.constant 0.000000e+00 : f32
    %113 = vector.broadcast %cst_36 : f32 to vector<1x128xf32>
    %114 = vector.extract_strided_slice %111 {offsets = [0, 0], sizes = [31, 128], strides = [1, 1]} : vector<32x128xf32> to vector<31x128xf32>
    %115 = tpu.concatenate %113, %114 in 0 : vector<1x128xf32>, vector<31x128xf32> -> vector<32x128xf32>
    %cst_37 = arith.constant 0.000000e+00 : f32
    %116 = vector.shape_cast %25 : vector<32x1xi1> to vector<32x1xi1>
    %117 = vector.broadcast %116 : vector<32x1xi1> to vector<32x128xi1>
    %118 = vector.broadcast %cst_37 : f32 to vector<32x128xf32>
    %119 = arith.select %117, %115, %118 : vector<32x128xi1>, vector<32x128xf32>
    %cst_38 = arith.constant 0.000000e+00 : f32
    %120 = vector.broadcast %cst_38 : f32 to vector<32x8xf32>
    %121 = vector.extract_strided_slice %119 {offsets = [0, 0], sizes = [32, 120], strides = [1, 1]} : vector<32x128xf32> to vector<32x120xf32>
    %122 = tpu.concatenate %120, %121 in 1 : vector<32x8xf32>, vector<32x120xf32> -> vector<32x128xf32>
    %123 = vector.extract_strided_slice %112 {offsets = [0, 0], sizes = [1, 128], strides = [1, 1]} : vector<9x128xf32> to vector<1x128xf32>
    %124 = vector.broadcast %123 : vector<1x128xf32> to vector<32x128xf32>
    %125 = arith.mulf %122, %124 : vector<32x128xf32>
    %126 = vector.extract_strided_slice %112 {offsets = [1, 0], sizes = [1, 128], strides = [1, 1]} : vector<9x128xf32> to vector<1x128xf32>
    %127 = vector.broadcast %126 : vector<1x128xf32> to vector<32x128xf32>
    %128 = arith.mulf %119, %127 : vector<32x128xf32>
    %129 = arith.addf %125, %128 : vector<32x128xf32>
    %cst_39 = arith.constant 0.000000e+00 : f32
    %130 = vector.broadcast %cst_39 : f32 to vector<32x8xf32>
    %131 = vector.extract_strided_slice %119 {offsets = [0, 8], sizes = [32, 120], strides = [1, 1]} : vector<32x128xf32> to vector<32x120xf32>
    %132 = tpu.concatenate %131, %130 in 1 : vector<32x120xf32>, vector<32x8xf32> -> vector<32x128xf32>
    %133 = vector.extract_strided_slice %112 {offsets = [2, 0], sizes = [1, 128], strides = [1, 1]} : vector<9x128xf32> to vector<1x128xf32>
    %134 = vector.broadcast %133 : vector<1x128xf32> to vector<32x128xf32>
    %135 = arith.mulf %132, %134 : vector<32x128xf32>
    %136 = arith.addf %129, %135 : vector<32x128xf32>
    %cst_40 = arith.constant 0.000000e+00 : f32
    %137 = vector.broadcast %cst_40 : f32 to vector<32x8xf32>
    %138 = vector.extract_strided_slice %111 {offsets = [0, 0], sizes = [32, 120], strides = [1, 1]} : vector<32x128xf32> to vector<32x120xf32>
    %139 = tpu.concatenate %137, %138 in 1 : vector<32x8xf32>, vector<32x120xf32> -> vector<32x128xf32>
    %140 = vector.extract_strided_slice %112 {offsets = [3, 0], sizes = [1, 128], strides = [1, 1]} : vector<9x128xf32> to vector<1x128xf32>
    %141 = vector.broadcast %140 : vector<1x128xf32> to vector<32x128xf32>
    %142 = arith.mulf %139, %141 : vector<32x128xf32>
    %143 = arith.addf %136, %142 : vector<32x128xf32>
    %144 = vector.extract_strided_slice %112 {offsets = [4, 0], sizes = [1, 128], strides = [1, 1]} : vector<9x128xf32> to vector<1x128xf32>
    %145 = vector.broadcast %144 : vector<1x128xf32> to vector<32x128xf32>
    %146 = arith.mulf %111, %145 : vector<32x128xf32>
    %147 = arith.addf %143, %146 : vector<32x128xf32>
    %cst_41 = arith.constant 0.000000e+00 : f32
    %148 = vector.broadcast %cst_41 : f32 to vector<32x8xf32>
    %149 = vector.extract_strided_slice %111 {offsets = [0, 8], sizes = [32, 120], strides = [1, 1]} : vector<32x128xf32> to vector<32x120xf32>
    %150 = tpu.concatenate %149, %148 in 1 : vector<32x120xf32>, vector<32x8xf32> -> vector<32x128xf32>
    %151 = vector.extract_strided_slice %112 {offsets = [5, 0], sizes = [1, 128], strides = [1, 1]} : vector<9x128xf32> to vector<1x128xf32>
    %152 = vector.broadcast %151 : vector<1x128xf32> to vector<32x128xf32>
    %153 = arith.mulf %150, %152 : vector<32x128xf32>
    %154 = arith.addf %147, %153 : vector<32x128xf32>
    %cst_42 = arith.constant 0.000000e+00 : f32
    %155 = vector.broadcast %cst_42 : f32 to vector<1x128xf32>
    %156 = vector.extract_strided_slice %111 {offsets = [1, 0], sizes = [31, 128], strides = [1, 1]} : vector<32x128xf32> to vector<31x128xf32>
    %157 = tpu.concatenate %156, %155 in 0 : vector<31x128xf32>, vector<1x128xf32> -> vector<32x128xf32>
    %cst_43 = arith.constant 0.000000e+00 : f32
    %158 = vector.shape_cast %34 : vector<32x1xi1> to vector<32x1xi1>
    %159 = vector.broadcast %158 : vector<32x1xi1> to vector<32x128xi1>
    %160 = vector.broadcast %cst_43 : f32 to vector<32x128xf32>
    %161 = arith.select %159, %157, %160 : vector<32x128xi1>, vector<32x128xf32>
    %cst_44 = arith.constant 0.000000e+00 : f32
    %162 = vector.broadcast %cst_44 : f32 to vector<32x8xf32>
    %163 = vector.extract_strided_slice %161 {offsets = [0, 0], sizes = [32, 120], strides = [1, 1]} : vector<32x128xf32> to vector<32x120xf32>
    %164 = tpu.concatenate %162, %163 in 1 : vector<32x8xf32>, vector<32x120xf32> -> vector<32x128xf32>
    %165 = vector.extract_strided_slice %112 {offsets = [6, 0], sizes = [1, 128], strides = [1, 1]} : vector<9x128xf32> to vector<1x128xf32>
    %166 = vector.broadcast %165 : vector<1x128xf32> to vector<32x128xf32>
    %167 = arith.mulf %164, %166 : vector<32x128xf32>
    %168 = arith.addf %154, %167 : vector<32x128xf32>
    %169 = vector.extract_strided_slice %112 {offsets = [7, 0], sizes = [1, 128], strides = [1, 1]} : vector<9x128xf32> to vector<1x128xf32>
    %170 = vector.broadcast %169 : vector<1x128xf32> to vector<32x128xf32>
    %171 = arith.mulf %161, %170 : vector<32x128xf32>
    %172 = arith.addf %168, %171 : vector<32x128xf32>
    %cst_45 = arith.constant 0.000000e+00 : f32
    %173 = vector.broadcast %cst_45 : f32 to vector<32x8xf32>
    %174 = vector.extract_strided_slice %161 {offsets = [0, 8], sizes = [32, 120], strides = [1, 1]} : vector<32x128xf32> to vector<32x120xf32>
    %175 = tpu.concatenate %174, %173 in 1 : vector<32x120xf32>, vector<32x8xf32> -> vector<32x128xf32>
    %176 = vector.extract_strided_slice %112 {offsets = [8, 0], sizes = [1, 128], strides = [1, 1]} : vector<9x128xf32> to vector<1x128xf32>
    %177 = vector.broadcast %176 : vector<1x128xf32> to vector<32x128xf32>
    %178 = arith.mulf %175, %177 : vector<32x128xf32>
    %179 = arith.addf %172, %178 : vector<32x128xf32>
    %180 = arith.truncf %179 : vector<32x128xf32> to vector<32x128xbf16>
    %c0_46 = arith.constant 0 : index
    %c0_47 = arith.constant 0 : index
    %181 = vector.load %arg2[%c0_46, %c0_47] : memref<128x128xbf16, #tpu.memory_space<vmem>>, vector<128x128xbf16>
    %cst_48 = arith.constant dense<0.000000e+00> : vector<32x128xf32>
    %182 = tpu.matmul %180, %181, %cst_48 {dimension_numbers = #tpu.dot_dimension_numbers<[1], [0], [0], [1], [0, 0, 1, 1], [], []>} : vector<32x128xbf16>, vector<128x128xbf16>, vector<32x128xf32> -> vector<32x128xf32>
    %cst_49 = arith.constant dense<0.000000e+00> : vector<128xf32>
    %183 = vector.multi_reduction <add>, %182, %cst_49 [0] : vector<32x128xf32> to vector<128xf32>
    %184 = vector.shape_cast %183 : vector<128xf32> to vector<1x128xf32>
    %cst_50 = arith.constant dense<0.000000e+00> : vector<1x128xf32>
    %185 = tpu.matmul %184, %71, %cst_50 {dimension_numbers = #tpu.dot_dimension_numbers<[1], [0], [0], [1], [0, 0, 1, 1], [], []>} : vector<1x128xf32>, vector<128x128xf32>, vector<1x128xf32> -> vector<1x128xf32>
    %cst_51 = arith.constant 0.001953125 : f32
    %186 = vector.broadcast %cst_51 : f32 to vector<1x128xf32>
    %187 = arith.mulf %185, %186 : vector<1x128xf32>
    %188 = vector.broadcast %187 : vector<1x128xf32> to vector<32x128xf32>
    %189 = arith.subf %182, %188 : vector<32x128xf32>
    %190 = arith.mulf %189, %189 : vector<32x128xf32>
    %cst_52 = arith.constant dense<0.000000e+00> : vector<128xf32>
    %191 = vector.multi_reduction <add>, %190, %cst_52 [0] : vector<32x128xf32> to vector<128xf32>
    %192 = vector.shape_cast %191 : vector<128xf32> to vector<1x128xf32>
    %cst_53 = arith.constant dense<0.000000e+00> : vector<1x128xf32>
    %193 = tpu.matmul %192, %71, %cst_53 {dimension_numbers = #tpu.dot_dimension_numbers<[1], [0], [0], [1], [0, 0, 1, 1], [], []>} : vector<1x128xf32>, vector<128x128xf32>, vector<1x128xf32> -> vector<1x128xf32>
    %cst_54 = arith.constant 0.001953125 : f32
    %194 = vector.broadcast %cst_54 : f32 to vector<1x128xf32>
    %195 = arith.mulf %193, %194 : vector<1x128xf32>
    %cst_55 = arith.constant 1.000000e-03 : f32
    %196 = vector.broadcast %cst_55 : f32 to vector<1x128xf32>
    %197 = arith.addf %195, %196 : vector<1x128xf32>
    %198 = math.rsqrt %197 : vector<1x128xf32>
    %c0_56 = arith.constant 0 : index
    %c0_57 = arith.constant 0 : index
    %199 = vector.load %arg3[%c0_56, %c0_57] : memref<1x128xf32, #tpu.memory_space<vmem>>, vector<1x128xf32>
    %200 = arith.mulf %198, %199 : vector<1x128xf32>
    %201 = vector.broadcast %200 : vector<1x128xf32> to vector<32x128xf32>
    %202 = arith.mulf %189, %201 : vector<32x128xf32>
    %c0_58 = arith.constant 0 : index
    %c0_59 = arith.constant 0 : index
    %203 = vector.load %arg4[%c0_58, %c0_59] : memref<1x128xf32, #tpu.memory_space<vmem>>, vector<1x128xf32>
    %204 = vector.broadcast %203 : vector<1x128xf32> to vector<32x128xf32>
    %205 = arith.addf %202, %204 : vector<32x128xf32>
    %cst_60 = arith.constant 0.000000e+00 : f32
    %206 = vector.broadcast %cst_60 : f32 to vector<32x128xf32>
    %207 = arith.maximumf %205, %206 : vector<32x128xf32>
    %c0_61 = arith.constant 0 : index
    %c0_62 = arith.constant 0 : index
    %208 = vector.load %arg5[%c0_61, %c0_62] : memref<9x128xf32, #tpu.memory_space<vmem>>, vector<9x128xf32>
    %cst_63 = arith.constant 0.000000e+00 : f32
    %209 = vector.broadcast %cst_63 : f32 to vector<1x128xf32>
    %210 = vector.extract_strided_slice %207 {offsets = [0, 0], sizes = [31, 128], strides = [1, 1]} : vector<32x128xf32> to vector<31x128xf32>
    %211 = tpu.concatenate %209, %210 in 0 : vector<1x128xf32>, vector<31x128xf32> -> vector<32x128xf32>
    %cst_64 = arith.constant 0.000000e+00 : f32
    %212 = vector.shape_cast %25 : vector<32x1xi1> to vector<32x1xi1>
    %213 = vector.broadcast %212 : vector<32x1xi1> to vector<32x128xi1>
    %214 = vector.broadcast %cst_64 : f32 to vector<32x128xf32>
    %215 = arith.select %213, %211, %214 : vector<32x128xi1>, vector<32x128xf32>
    %cst_65 = arith.constant 0.000000e+00 : f32
    %216 = vector.broadcast %cst_65 : f32 to vector<32x8xf32>
    %217 = vector.extract_strided_slice %215 {offsets = [0, 0], sizes = [32, 120], strides = [1, 1]} : vector<32x128xf32> to vector<32x120xf32>
    %218 = tpu.concatenate %216, %217 in 1 : vector<32x8xf32>, vector<32x120xf32> -> vector<32x128xf32>
    %219 = vector.extract_strided_slice %208 {offsets = [0, 0], sizes = [1, 128], strides = [1, 1]} : vector<9x128xf32> to vector<1x128xf32>
    %220 = vector.broadcast %219 : vector<1x128xf32> to vector<32x128xf32>
    %221 = arith.mulf %218, %220 : vector<32x128xf32>
    %222 = vector.extract_strided_slice %208 {offsets = [1, 0], sizes = [1, 128], strides = [1, 1]} : vector<9x128xf32> to vector<1x128xf32>
    %223 = vector.broadcast %222 : vector<1x128xf32> to vector<32x128xf32>
    %224 = arith.mulf %215, %223 : vector<32x128xf32>
    %225 = arith.addf %221, %224 : vector<32x128xf32>
    %cst_66 = arith.constant 0.000000e+00 : f32
    %226 = vector.broadcast %cst_66 : f32 to vector<32x8xf32>
    %227 = vector.extract_strided_slice %215 {offsets = [0, 8], sizes = [32, 120], strides = [1, 1]} : vector<32x128xf32> to vector<32x120xf32>
    %228 = tpu.concatenate %227, %226 in 1 : vector<32x120xf32>, vector<32x8xf32> -> vector<32x128xf32>
    %229 = vector.extract_strided_slice %208 {offsets = [2, 0], sizes = [1, 128], strides = [1, 1]} : vector<9x128xf32> to vector<1x128xf32>
    %230 = vector.broadcast %229 : vector<1x128xf32> to vector<32x128xf32>
    %231 = arith.mulf %228, %230 : vector<32x128xf32>
    %232 = arith.addf %225, %231 : vector<32x128xf32>
    %cst_67 = arith.constant 0.000000e+00 : f32
    %233 = vector.broadcast %cst_67 : f32 to vector<32x8xf32>
    %234 = vector.extract_strided_slice %207 {offsets = [0, 0], sizes = [32, 120], strides = [1, 1]} : vector<32x128xf32> to vector<32x120xf32>
    %235 = tpu.concatenate %233, %234 in 1 : vector<32x8xf32>, vector<32x120xf32> -> vector<32x128xf32>
    %236 = vector.extract_strided_slice %208 {offsets = [3, 0], sizes = [1, 128], strides = [1, 1]} : vector<9x128xf32> to vector<1x128xf32>
    %237 = vector.broadcast %236 : vector<1x128xf32> to vector<32x128xf32>
    %238 = arith.mulf %235, %237 : vector<32x128xf32>
    %239 = arith.addf %232, %238 : vector<32x128xf32>
    %240 = vector.extract_strided_slice %208 {offsets = [4, 0], sizes = [1, 128], strides = [1, 1]} : vector<9x128xf32> to vector<1x128xf32>
    %241 = vector.broadcast %240 : vector<1x128xf32> to vector<32x128xf32>
    %242 = arith.mulf %207, %241 : vector<32x128xf32>
    %243 = arith.addf %239, %242 : vector<32x128xf32>
    %cst_68 = arith.constant 0.000000e+00 : f32
    %244 = vector.broadcast %cst_68 : f32 to vector<32x8xf32>
    %245 = vector.extract_strided_slice %207 {offsets = [0, 8], sizes = [32, 120], strides = [1, 1]} : vector<32x128xf32> to vector<32x120xf32>
    %246 = tpu.concatenate %245, %244 in 1 : vector<32x120xf32>, vector<32x8xf32> -> vector<32x128xf32>
    %247 = vector.extract_strided_slice %208 {offsets = [5, 0], sizes = [1, 128], strides = [1, 1]} : vector<9x128xf32> to vector<1x128xf32>
    %248 = vector.broadcast %247 : vector<1x128xf32> to vector<32x128xf32>
    %249 = arith.mulf %246, %248 : vector<32x128xf32>
    %250 = arith.addf %243, %249 : vector<32x128xf32>
    %cst_69 = arith.constant 0.000000e+00 : f32
    %251 = vector.broadcast %cst_69 : f32 to vector<1x128xf32>
    %252 = vector.extract_strided_slice %207 {offsets = [1, 0], sizes = [31, 128], strides = [1, 1]} : vector<32x128xf32> to vector<31x128xf32>
    %253 = tpu.concatenate %252, %251 in 0 : vector<31x128xf32>, vector<1x128xf32> -> vector<32x128xf32>
    %cst_70 = arith.constant 0.000000e+00 : f32
    %254 = vector.shape_cast %34 : vector<32x1xi1> to vector<32x1xi1>
    %255 = vector.broadcast %254 : vector<32x1xi1> to vector<32x128xi1>
    %256 = vector.broadcast %cst_70 : f32 to vector<32x128xf32>
    %257 = arith.select %255, %253, %256 : vector<32x128xi1>, vector<32x128xf32>
    %cst_71 = arith.constant 0.000000e+00 : f32
    %258 = vector.broadcast %cst_71 : f32 to vector<32x8xf32>
    %259 = vector.extract_strided_slice %257 {offsets = [0, 0], sizes = [32, 120], strides = [1, 1]} : vector<32x128xf32> to vector<32x120xf32>
    %260 = tpu.concatenate %258, %259 in 1 : vector<32x8xf32>, vector<32x120xf32> -> vector<32x128xf32>
    %261 = vector.extract_strided_slice %208 {offsets = [6, 0], sizes = [1, 128], strides = [1, 1]} : vector<9x128xf32> to vector<1x128xf32>
    %262 = vector.broadcast %261 : vector<1x128xf32> to vector<32x128xf32>
    %263 = arith.mulf %260, %262 : vector<32x128xf32>
    %264 = arith.addf %250, %263 : vector<32x128xf32>
    %265 = vector.extract_strided_slice %208 {offsets = [7, 0], sizes = [1, 128], strides = [1, 1]} : vector<9x128xf32> to vector<1x128xf32>
    %266 = vector.broadcast %265 : vector<1x128xf32> to vector<32x128xf32>
    %267 = arith.mulf %257, %266 : vector<32x128xf32>
    %268 = arith.addf %264, %267 : vector<32x128xf32>
    %cst_72 = arith.constant 0.000000e+00 : f32
    %269 = vector.broadcast %cst_72 : f32 to vector<32x8xf32>
    %270 = vector.extract_strided_slice %257 {offsets = [0, 8], sizes = [32, 120], strides = [1, 1]} : vector<32x128xf32> to vector<32x120xf32>
    %271 = tpu.concatenate %270, %269 in 1 : vector<32x120xf32>, vector<32x8xf32> -> vector<32x128xf32>
    %272 = vector.extract_strided_slice %208 {offsets = [8, 0], sizes = [1, 128], strides = [1, 1]} : vector<9x128xf32> to vector<1x128xf32>
    %273 = vector.broadcast %272 : vector<1x128xf32> to vector<32x128xf32>
    %274 = arith.mulf %271, %273 : vector<32x128xf32>
    %275 = arith.addf %268, %274 : vector<32x128xf32>
    %276 = arith.truncf %275 : vector<32x128xf32> to vector<32x128xbf16>
    %c0_73 = arith.constant 0 : index
    %c0_74 = arith.constant 0 : index
    %277 = vector.load %arg6[%c0_73, %c0_74] : memref<128x256xbf16, #tpu.memory_space<vmem>>, vector<128x256xbf16>
    %cst_75 = arith.constant dense<0.000000e+00> : vector<32x256xf32>
    %278 = tpu.matmul %276, %277, %cst_75 {dimension_numbers = #tpu.dot_dimension_numbers<[1], [0], [0], [1], [0, 0, 1, 1], [], []>} : vector<32x128xbf16>, vector<128x256xbf16>, vector<32x256xf32> -> vector<32x256xf32>
    %cst_76 = arith.constant dense<0.000000e+00> : vector<256xf32>
    %279 = vector.multi_reduction <add>, %278, %cst_76 [0] : vector<32x256xf32> to vector<256xf32>
    %280 = vector.shape_cast %279 : vector<256xf32> to vector<1x256xf32>
    %cst_77 = arith.constant dense<0.000000e+00> : vector<1x256xf32>
    %281 = tpu.matmul %280, %108, %cst_77 {dimension_numbers = #tpu.dot_dimension_numbers<[1], [0], [0], [1], [0, 0, 1, 1], [], []>} : vector<1x256xf32>, vector<256x256xf32>, vector<1x256xf32> -> vector<1x256xf32>
    %cst_78 = arith.constant 0.001953125 : f32
    %282 = vector.broadcast %cst_78 : f32 to vector<1x256xf32>
    %283 = arith.mulf %281, %282 : vector<1x256xf32>
    %284 = vector.broadcast %283 : vector<1x256xf32> to vector<32x256xf32>
    %285 = arith.subf %278, %284 : vector<32x256xf32>
    %286 = arith.mulf %285, %285 : vector<32x256xf32>
    %cst_79 = arith.constant dense<0.000000e+00> : vector<256xf32>
    %287 = vector.multi_reduction <add>, %286, %cst_79 [0] : vector<32x256xf32> to vector<256xf32>
    %288 = vector.shape_cast %287 : vector<256xf32> to vector<1x256xf32>
    %cst_80 = arith.constant dense<0.000000e+00> : vector<1x256xf32>
    %289 = tpu.matmul %288, %108, %cst_80 {dimension_numbers = #tpu.dot_dimension_numbers<[1], [0], [0], [1], [0, 0, 1, 1], [], []>} : vector<1x256xf32>, vector<256x256xf32>, vector<1x256xf32> -> vector<1x256xf32>
    %cst_81 = arith.constant 0.001953125 : f32
    %290 = vector.broadcast %cst_81 : f32 to vector<1x256xf32>
    %291 = arith.mulf %289, %290 : vector<1x256xf32>
    %cst_82 = arith.constant 1.000000e-03 : f32
    %292 = vector.broadcast %cst_82 : f32 to vector<1x256xf32>
    %293 = arith.addf %291, %292 : vector<1x256xf32>
    %294 = math.rsqrt %293 : vector<1x256xf32>
    %c0_83 = arith.constant 0 : index
    %c0_84 = arith.constant 0 : index
    %295 = vector.load %arg7[%c0_83, %c0_84] : memref<1x256xf32, #tpu.memory_space<vmem>>, vector<1x256xf32>
    %296 = arith.mulf %294, %295 : vector<1x256xf32>
    %297 = vector.broadcast %296 : vector<1x256xf32> to vector<32x256xf32>
    %298 = arith.mulf %285, %297 : vector<32x256xf32>
    %c0_85 = arith.constant 0 : index
    %c0_86 = arith.constant 0 : index
    %299 = vector.load %arg8[%c0_85, %c0_86] : memref<1x256xf32, #tpu.memory_space<vmem>>, vector<1x256xf32>
    %300 = vector.broadcast %299 : vector<1x256xf32> to vector<32x256xf32>
    %301 = arith.addf %298, %300 : vector<32x256xf32>
    %c0_87 = arith.constant 0 : index
    %c0_88 = arith.constant 0 : index
    %302 = vector.load %arg9[%c0_87, %c0_88] : memref<32x256xf32, #tpu.memory_space<vmem>>, vector<32x256xf32>
    tpu.vector_store %arg9[%c0_87, %c0_88], %301 {strides = array<i32>} : memref<32x256xf32, #tpu.memory_space<vmem>>, vector<32x256xf32>,
    return
  }
}

</mosaic_0001>

<llo_original>
// kernel: two_separables_forward.1
$region0: #{two_separables_forward.1}
  #allocation0 [shape = 'u32[]', space=smem, size = 0x4, offset = 0x4, fixed_abs, tag = 'smem constant byte address 0x4 - core index']
  #allocation1 [shape = 'u32[144,128]{1,0:T(1,128)}', space=vmem, size = 0x12000, scoped, tag = 'internal scratch']
  %s0 = inlined_call_operand.vmem [shape: f32[32,128], index: 0, kind: input, shape index: {}]
  %s1 = inlined_call_operand.vmem [shape: f32[9,128], index: 1, kind: input, shape index: {}]
  %s2 = inlined_call_operand.vmem [shape: bf16[128,128], index: 2, kind: input, shape index: {}]
  %s3 = inlined_call_operand.vmem [shape: f32[1,128], index: 3, kind: input, shape index: {}]
  %s4 = inlined_call_operand.vmem [shape: f32[1,128], index: 4, kind: input, shape index: {}]
  %s5 = inlined_call_operand.vmem [shape: f32[9,128], index: 5, kind: input, shape index: {}]
  %s6 = inlined_call_operand.vmem [shape: bf16[128,256], index: 6, kind: input, shape index: {}]
  %s7 = inlined_call_operand.vmem [shape: f32[1,256], index: 7, kind: input, shape index: {}]
  %s8 = inlined_call_operand.vmem [shape: f32[1,256], index: 8, kind: input, shape index: {}]
  %s9 = inlined_call_operand.vmem [shape: f32[32,256], index: 9, kind: output, shape index: {}]
  %s10 = sld [smem:[#allocation0]]
  $region46: #{two_separables_forward.1} parent=0
    _
  %s12 = ssub.s32 1, %s10
  %s13 = scalar_select 0, %s12, %s10
  // Predicated region
  $region2: #{two_separables_forward.1} parent=0 // pred_check
    _
  $region3: #{two_separables_forward.1} parent=0 // pred_check_branch
    %15 = sbr.rel (0) target = $region5
  $region4: #{two_separables_forward.1} parent=0 // pred_region
    _
  $region5: #{two_separables_forward.1} parent=0 // pred_fallthru
    _
  // Predicated region
  $region6: #{two_separables_forward.1} parent=0 // pred_check
    _
  $region7: #{two_separables_forward.1} parent=0 // pred_check_branch
    %17 = sbr.rel (0) target = $region9
  $region8: #{two_separables_forward.1} parent=0 // pred_region
    _
  $region9: #{two_separables_forward.1} parent=0 // pred_fallthru
    _
  // Predicated region
  $region10: #{two_separables_forward.1} parent=0 // pred_check
    _
  $region11: #{two_separables_forward.1} parent=0 // pred_check_branch
    %19 = sbr.rel (0) target = $region13
  $region12: #{two_separables_forward.1} parent=0 // pred_region
    _
  $region13: #{two_separables_forward.1} parent=0 // pred_fallthru
    _
  // Predicated region
  $region14: #{two_separables_forward.1} parent=0 // pred_check
    _
  $region15: #{two_separables_forward.1} parent=0 // pred_check_branch
    %21 = sbr.rel (0) target = $region17
  $region16: #{two_separables_forward.1} parent=0 // pred_region
    _
  $region17: #{two_separables_forward.1} parent=0 // pred_fallthru
    _
  // Predicated region
  $region18: #{two_separables_forward.1} parent=0 // pred_check
    _
  $region19: #{two_separables_forward.1} parent=0 // pred_check_branch
    %23 = sbr.rel (0) target = $region21
  $region20: #{two_separables_forward.1} parent=0 // pred_region
    _
  $region21: #{two_separables_forward.1} parent=0 // pred_fallthru
    _
  // Predicated region
  $region22: #{two_separables_forward.1} parent=0 // pred_check
    _
  $region23: #{two_separables_forward.1} parent=0 // pred_check_branch
    %25 = sbr.rel (0) target = $region25
  $region24: #{two_separables_forward.1} parent=0 // pred_region
    _
  $region25: #{two_separables_forward.1} parent=0 // pred_fallthru
    _
  // Predicated region
  $region26: #{two_separables_forward.1} parent=0 // pred_check
    _
  $region27: #{two_separables_forward.1} parent=0 // pred_check_branch
    %27 = sbr.rel (0) target = $region29
  $region28: #{two_separables_forward.1} parent=0 // pred_region
    _
  $region29: #{two_separables_forward.1} parent=0 // pred_fallthru
    _
  // Predicated region
  $region30: #{two_separables_forward.1} parent=0 // pred_check
    _
  $region31: #{two_separables_forward.1} parent=0 // pred_check_branch
    %29 = sbr.rel (0) target = $region33
  $region32: #{two_separables_forward.1} parent=0 // pred_region
    _
  $region33: #{two_separables_forward.1} parent=0 // pred_fallthru
    _
  // Predicated region
  $region34: #{two_separables_forward.1} parent=0 // pred_check
    _
  $region35: #{two_separables_forward.1} parent=0 // pred_check_branch
    %31 = sbr.rel (0) target = $region37
  $region36: #{two_separables_forward.1} parent=0 // pred_region
    _
  $region37: #{two_separables_forward.1} parent=0 // pred_fallthru
    _
  %v33 = vlaneseq
  %v34 = vshrl.u32 %v33, 7
  %v35 = vadd.s32 %v34, 8
  %v36 = vadd.s32 %v34, 16
  %v37 = vadd.s32 %v34, 24
  %vm38 = vcmp.lt.s32.totalorder %v34, 0
  %v39 = vsub.s32 0, %v34
  %v40 = vsel %vm38, %v39, %v34
  %v41 = vshrl.u32 %v40, 4
  %v42 = vand.u32 %v40, 15
  %v43 = vsub.s32 0, %v42
  %v44 = vsel %vm38, %v43, %v42
  %vm45 = vcmp.lt.s32.totalorder %v35, 0
  %v46 = vsub.s32 0, %v35
  %v47 = vsel %vm45, %v46, %v35
  %v48 = vshrl.u32 %v47, 4
  %v49 = vand.u32 %v47, 15
  %v50 = vsub.s32 0, %v49
  %v51 = vsel %vm45, %v50, %v49
  %vm52 = vcmp.lt.s32.totalorder %v36, 0
  %v53 = vsub.s32 0, %v36
  %v54 = vsel %vm52, %v53, %v36
  %v55 = vshrl.u32 %v54, 4
  %v56 = vand.u32 %v54, 15
  %v57 = vsub.s32 0, %v56
  %v58 = vsel %vm52, %v57, %v56
  %vm59 = vcmp.lt.s32.totalorder %v37, 0
  %v60 = vsub.s32 0, %v37
  %v61 = vsel %vm59, %v60, %v37
  %v62 = vshrl.u32 %v61, 4
  %v63 = vand.u32 %v61, 15
  %v64 = vsub.s32 0, %v63
  %v65 = vsel %vm59, %v64, %v63
  %vm66 = vcmp.ne.s32.totalorder %v44, 0
  %vm67 = vcmp.ne.s32.totalorder %v51, 0
  %vm68 = vcmp.ne.s32.totalorder %v58, 0
  %vm69 = vcmp.ne.s32.totalorder %v65, 0
  %vm70 = vcmp.lt.s32.totalorder %v44, 0
  %vm71 = vcmp.lt.s32.totalorder %v51, 0
  %vm72 = vcmp.lt.s32.totalorder %v58, 0
  %vm73 = vcmp.lt.s32.totalorder %v65, 0
  %vm74 = vmand %vm70, %vm66
  %vm75 = vmand %vm71, %vm67
  %vm76 = vmand %vm72, %vm68
  %vm77 = vmand %vm73, %vm69
  %v78 = vadd.s32 %v44, 16
  %v79 = vadd.s32 %v51, 16
  %v80 = vadd.s32 %v58, 16
  %v81 = vadd.s32 %v65, 16
  %v82 = vsel %vm74, %v78, %v44
  %v83 = vsel %vm75, %v79, %v51
  %v84 = vsel %vm76, %v80, %v58
  %v85 = vsel %vm77, %v81, %v65
  %v86 = vadd.s32 %v82, 4294967295
  %v87 = vadd.s32 %v83, 4294967295
  %v88 = vadd.s32 %v84, 4294967295
  %v89 = vadd.s32 %v85, 4294967295
  %vm90 = vcmp.ge.s32.totalorder %v86, 0
  %vm91 = vcmp.ge.s32.totalorder %v87, 0
  %vm92 = vcmp.ge.s32.totalorder %v88, 0
  %vm93 = vcmp.ge.s32.totalorder %v89, 0
  %vm94 = vcmp.lt.s32.totalorder %v86, 16
  %vm95 = vcmp.lt.s32.totalorder %v87, 16
  %vm96 = vcmp.lt.s32.totalorder %v88, 16
  %vm97 = vcmp.lt.s32.totalorder %v89, 16
  %vm98 = vmand %vm90, %vm94
  %vm99 = vmand %vm91, %vm95
  %vm100 = vmand %vm92, %vm96
  %vm101 = vmand %vm93, %vm97
  %v102 = vadd.s32 %v82, 1
  %v103 = vadd.s32 %v83, 1
  %v104 = vadd.s32 %v84, 1
  %v105 = vadd.s32 %v85, 1
  %vm106 = vcmp.ge.s32.totalorder %v102, 0
  %vm107 = vcmp.ge.s32.totalorder %v103, 0
  %vm108 = vcmp.ge.s32.totalorder %v104, 0
  %vm109 = vcmp.ge.s32.totalorder %v105, 0
  %vm110 = vcmp.lt.s32.totalorder %v102, 16
  %vm111 = vcmp.lt.s32.totalorder %v103, 16
  %vm112 = vcmp.lt.s32.totalorder %v104, 16
  %vm113 = vcmp.lt.s32.totalorder %v105, 16
  %vm114 = vmand %vm106, %vm110
  %vm115 = vmand %vm107, %vm111
  %vm116 = vmand %vm108, %vm112
  %vm117 = vmand %vm109, %vm113
  %v118 = vadd.s32 %v34, 32
  %v119 = vadd.s32 %v34, 40
  %v120 = vadd.s32 %v34, 48
  %v121 = vadd.s32 %v34, 56
  %v122 = vadd.s32 %v34, 64
  %v123 = vadd.s32 %v34, 72
  %v124 = vadd.s32 %v34, 80
  %v125 = vadd.s32 %v34, 88
  %v126 = vadd.s32 %v34, 96
  %v127 = vadd.s32 %v34, 104
  %v128 = vadd.s32 %v34, 112
  %v129 = vadd.s32 %v34, 120
  %v130 = vlaneseq
  %v131 = vand.u32 %v130, 127
  %vm132 = vcmp.lt.s32.totalorder %v34, 0
  %v133 = vsub.s32 0, %v34
  %v134 = vsel %vm132, %v133, %v34
  %v135 = vshrl.u32 %v134, 3
  %v136 = vand.u32 %v134, 7
  %v137 = vsub.s32 0, %v136
  %v138 = vsel %vm132, %v137, %v136
  %vm139 = vcmp.lt.s32.totalorder %v35, 0
  %v140 = vsub.s32 0, %v35
  %v141 = vsel %vm139, %v140, %v35
  %v142 = vshrl.u32 %v141, 3
  %v143 = vand.u32 %v141, 7
  %v144 = vsub.s32 0, %v143
  %v145 = vsel %vm139, %v144, %v143
  %vm146 = vcmp.lt.s32.totalorder %v36, 0
  %v147 = vsub.s32 0, %v36
  %v148 = vsel %vm146, %v147, %v36
  %v149 = vshrl.u32 %v148, 3
  %v150 = vand.u32 %v148, 7
  %v151 = vsub.s32 0, %v150
  %v152 = vsel %vm146, %v151, %v150
  %vm153 = vcmp.lt.s32.totalorder %v37, 0
  %v154 = vsub.s32 0, %v37
  %v155 = vsel %vm153, %v154, %v37
  %v156 = vshrl.u32 %v155, 3
  %v157 = vand.u32 %v155, 7
  %v158 = vsub.s32 0, %v157
  %v159 = vsel %vm153, %v158, %v157
  %vm160 = vcmp.lt.s32.totalorder %v118, 0
  %v161 = vsub.s32 0, %v118
  %v162 = vsel %vm160, %v161, %v118
  %v163 = vshrl.u32 %v162, 3
  %v164 = vand.u32 %v162, 7
  %v165 = vsub.s32 0, %v164
  %v166 = vsel %vm160, %v165, %v164
  %vm167 = vcmp.lt.s32.totalorder %v119, 0
  %v168 = vsub.s32 0, %v119
  %v169 = vsel %vm167, %v168, %v119
  %v170 = vshrl.u32 %v169, 3
  %v171 = vand.u32 %v169, 7
  %v172 = vsub.s32 0, %v171
  %v173 = vsel %vm167, %v172, %v171
  %vm174 = vcmp.lt.s32.totalorder %v120, 0
  %v175 = vsub.s32 0, %v120
  %v176 = vsel %vm174, %v175, %v120
  %v177 = vshrl.u32 %v176, 3
  %v178 = vand.u32 %v176, 7
  %v179 = vsub.s32 0, %v178
  %v180 = vsel %vm174, %v179, %v178
  %vm181 = vcmp.lt.s32.totalorder %v121, 0
  %v182 = vsub.s32 0, %v121
  %v183 = vsel %vm181, %v182, %v121
  %v184 = vshrl.u32 %v183, 3
  %v185 = vand.u32 %v183, 7
  %v186 = vsub.s32 0, %v185
  %v187 = vsel %vm181, %v186, %v185
  %vm188 = vcmp.lt.s32.totalorder %v122, 0
  %v189 = vsub.s32 0, %v122
  %v190 = vsel %vm188, %v189, %v122
  %v191 = vshrl.u32 %v190, 3
  %v192 = vand.u32 %v190, 7
  %v193 = vsub.s32 0, %v192
  %v194 = vsel %vm188, %v193, %v192
  %vm195 = vcmp.lt.s32.totalorder %v123, 0
  %v196 = vsub.s32 0, %v123
  %v197 = vsel %vm195, %v196, %v123
  %v198 = vshrl.u32 %v197, 3
  %v199 = vand.u32 %v197, 7
  %v200 = vsub.s32 0, %v199
  %v201 = vsel %vm195, %v200, %v199
  %vm202 = vcmp.lt.s32.totalorder %v124, 0
  %v203 = vsub.s32 0, %v124
  %v204 = vsel %vm202, %v203, %v124
  %v205 = vshrl.u32 %v204, 3
  %v206 = vand.u32 %v204, 7
  %v207 = vsub.s32 0, %v206
  %v208 = vsel %vm202, %v207, %v206
  %vm209 = vcmp.lt.s32.totalorder %v125, 0
  %v210 = vsub.s32 0, %v125
  %v211 = vsel %vm209, %v210, %v125
  %v212 = vshrl.u32 %v211, 3
  %v213 = vand.u32 %v211, 7
  %v214 = vsub.s32 0, %v213
  %v215 = vsel %vm209, %v214, %v213
  %vm216 = vcmp.lt.s32.totalorder %v126, 0
  %v217 = vsub.s32 0, %v126
  %v218 = vsel %vm216, %v217, %v126
  %v219 = vshrl.u32 %v218, 3
  %v220 = vand.u32 %v218, 7
  %v221 = vsub.s32 0, %v220
  %v222 = vsel %vm216, %v221, %v220
  %vm223 = vcmp.lt.s32.totalorder %v127, 0
  %v224 = vsub.s32 0, %v127
  %v225 = vsel %vm223, %v224, %v127
  %v226 = vshrl.u32 %v225, 3
  %v227 = vand.u32 %v225, 7
  %v228 = vsub.s32 0, %v227
  %v229 = vsel %vm223, %v228, %v227
  %vm230 = vcmp.lt.s32.totalorder %v128, 0
  %v231 = vsub.s32 0, %v128
  %v232 = vsel %vm230, %v231, %v128
  %v233 = vshrl.u32 %v232, 3
  %v234 = vand.u32 %v232, 7
  %v235 = vsub.s32 0, %v234
  %v236 = vsel %vm230, %v235, %v234
  %vm237 = vcmp.lt.s32.totalorder %v129, 0
  %v238 = vsub.s32 0, %v129
  %v239 = vsel %vm237, %v238, %v129
  %v240 = vshrl.u32 %v239, 3
  %v241 = vand.u32 %v239, 7
  %v242 = vsub.s32 0, %v241
  %v243 = vsel %vm237, %v242, %v241
  %vm244 = vcmp.ne.s32.totalorder %v138, 0
  %vm245 = vcmp.ne.s32.totalorder %v145, 0
  %vm246 = vcmp.ne.s32.totalorder %v152, 0
  %vm247 = vcmp.ne.s32.totalorder %v159, 0
  %vm248 = vcmp.ne.s32.totalorder %v166, 0
  %vm249 = vcmp.ne.s32.totalorder %v173, 0
  %vm250 = vcmp.ne.s32.totalorder %v180, 0
  %vm251 = vcmp.ne.s32.totalorder %v187, 0
  %vm252 = vcmp.ne.s32.totalorder %v194, 0
  %vm253 = vcmp.ne.s32.totalorder %v201, 0
  %vm254 = vcmp.ne.s32.totalorder %v208, 0
  %vm255 = vcmp.ne.s32.totalorder %v215, 0
  %vm256 = vcmp.ne.s32.totalorder %v222, 0
  %vm257 = vcmp.ne.s32.totalorder %v229, 0
  %vm258 = vcmp.ne.s32.totalorder %v236, 0
  %vm259 = vcmp.ne.s32.totalorder %v243, 0
  %vm260 = vcmp.lt.s32.totalorder %v138, 0
  %vm261 = vcmp.lt.s32.totalorder %v145, 0
  %vm262 = vcmp.lt.s32.totalorder %v152, 0
  %vm263 = vcmp.lt.s32.totalorder %v159, 0
  %vm264 = vcmp.lt.s32.totalorder %v166, 0
  %vm265 = vcmp.lt.s32.totalorder %v173, 0
  %vm266 = vcmp.lt.s32.totalorder %v180, 0
  %vm267 = vcmp.lt.s32.totalorder %v187, 0
  %vm268 = vcmp.lt.s32.totalorder %v194, 0
  %vm269 = vcmp.lt.s32.totalorder %v201, 0
  %vm270 = vcmp.lt.s32.totalorder %v208, 0
  %vm271 = vcmp.lt.s32.totalorder %v215, 0
  %vm272 = vcmp.lt.s32.totalorder %v222, 0
  %vm273 = vcmp.lt.s32.totalorder %v229, 0
  %vm274 = vcmp.lt.s32.totalorder %v236, 0
  %vm275 = vcmp.lt.s32.totalorder %v243, 0
  %vm276 = vmand %vm260, %vm244
  %vm277 = vmand %vm261, %vm245
  %vm278 = vmand %vm262, %vm246
  %vm279 = vmand %vm263, %vm247
  %vm280 = vmand %vm264, %vm248
  %vm281 = vmand %vm265, %vm249
  %vm282 = vmand %vm266, %vm250
  %vm283 = vmand %vm267, %vm251
  %vm284 = vmand %vm268, %vm252
  %vm285 = vmand %vm269, %vm253
  %vm286 = vmand %vm270, %vm254
  %vm287 = vmand %vm271, %vm255
  %vm288 = vmand %vm272, %vm256
  %vm289 = vmand %vm273, %vm257
  %vm290 = vmand %vm274, %vm258
  %vm291 = vmand %vm275, %vm259
  %v292 = vadd.s32 %v138, 8
  %v293 = vadd.s32 %v145, 8
  %v294 = vadd.s32 %v152, 8
  %v295 = vadd.s32 %v159, 8
  %v296 = vadd.s32 %v166, 8
  %v297 = vadd.s32 %v173, 8
  %v298 = vadd.s32 %v180, 8
  %v299 = vadd.s32 %v187, 8
  %v300 = vadd.s32 %v194, 8
  %v301 = vadd.s32 %v201, 8
  %v302 = vadd.s32 %v208, 8
  %v303 = vadd.s32 %v215, 8
  %v304 = vadd.s32 %v222, 8
  %v305 = vadd.s32 %v229, 8
  %v306 = vadd.s32 %v236, 8
  %v307 = vadd.s32 %v243, 8
  %v308 = vsel %vm276, %v292, %v138
  %v309 = vsel %vm277, %v293, %v145
  %v310 = vsel %vm278, %v294, %v152
  %v311 = vsel %vm279, %v295, %v159
  %v312 = vsel %vm280, %v296, %v166
  %v313 = vsel %vm281, %v297, %v173
  %v314 = vsel %vm282, %v298, %v180
  %v315 = vsel %vm283, %v299, %v187
  %v316 = vsel %vm284, %v300, %v194
  %v317 = vsel %vm285, %v301, %v201
  %v318 = vsel %vm286, %v302, %v208
  %v319 = vsel %vm287, %v303, %v215
  %v320 = vsel %vm288, %v304, %v222
  %v321 = vsel %vm289, %v305, %v229
  %v322 = vsel %vm290, %v306, %v236
  %v323 = vsel %vm291, %v307, %v243
  %vm324 = vcmp.lt.s32.totalorder %v131, 0
  %v325 = vsub.s32 0, %v131
  %v326 = vsel %vm324, %v325, %v131
  %v327 = vshrl.u32 %v326, 3
  %v328 = vand.u32 %v326, 7
  %v329 = vsub.s32 0, %v328
  %v330 = vsel %vm324, %v329, %v328
  %vm331 = vcmp.ne.s32.totalorder %v330, 0
  %vm332 = vcmp.lt.s32.totalorder %v330, 0
  %vm333 = vmand %vm332, %vm331
  %v334 = vadd.s32 %v330, 8
  %v335 = vsel %vm333, %v334, %v330
  %vm336 = vcmp.eq.s32.totalorder %v308, %v335
  %vm337 = vcmp.eq.s32.totalorder %v309, %v335
  %vm338 = vcmp.eq.s32.totalorder %v310, %v335
  %vm339 = vcmp.eq.s32.totalorder %v311, %v335
  %vm340 = vcmp.eq.s32.totalorder %v312, %v335
  %vm341 = vcmp.eq.s32.totalorder %v313, %v335
  %vm342 = vcmp.eq.s32.totalorder %v314, %v335
  %vm343 = vcmp.eq.s32.totalorder %v315, %v335
  %vm344 = vcmp.eq.s32.totalorder %v316, %v335
  %vm345 = vcmp.eq.s32.totalorder %v317, %v335
  %vm346 = vcmp.eq.s32.totalorder %v318, %v335
  %vm347 = vcmp.eq.s32.totalorder %v319, %v335
  %vm348 = vcmp.eq.s32.totalorder %v320, %v335
  %vm349 = vcmp.eq.s32.totalorder %v321, %v335
  %vm350 = vcmp.eq.s32.totalorder %v322, %v335
  %vm351 = vcmp.eq.s32.totalorder %v323, %v335
  %v352 = vsel %vm336, 1, 0
  %v353 = vsel %vm337, 1, 0
  %v354 = vsel %vm338, 1, 0
  %v355 = vsel %vm339, 1, 0
  %v356 = vsel %vm340, 1, 0
  %v357 = vsel %vm341, 1, 0
  %v358 = vsel %vm342, 1, 0
  %v359 = vsel %vm343, 1, 0
  %v360 = vsel %vm344, 1, 0
  %v361 = vsel %vm345, 1, 0
  %v362 = vsel %vm346, 1, 0
  %v363 = vsel %vm347, 1, 0
  %v364 = vsel %vm348, 1, 0
  %v365 = vsel %vm349, 1, 0
  %v366 = vsel %vm350, 1, 0
  %v367 = vsel %vm351, 1, 0
  %v368 = vcvt.s32.f32 %v352
  %v369 = vcvt.s32.f32 %v353
  %v370 = vcvt.s32.f32 %v354
  %v371 = vcvt.s32.f32 %v355
  %v372 = vcvt.s32.f32 %v356
  %v373 = vcvt.s32.f32 %v357
  %v374 = vcvt.s32.f32 %v358
  %v375 = vcvt.s32.f32 %v359
  %v376 = vcvt.s32.f32 %v360
  %v377 = vcvt.s32.f32 %v361
  %v378 = vcvt.s32.f32 %v362
  %v379 = vcvt.s32.f32 %v363
  %v380 = vcvt.s32.f32 %v364
  %v381 = vcvt.s32.f32 %v365
  %v382 = vcvt.s32.f32 %v366
  %v383 = vcvt.s32.f32 %v367
  %v384 = vadd.s32 %v34, 128
  %v385 = vadd.s32 %v34, 136
  %v386 = vadd.s32 %v34, 144
  %v387 = vadd.s32 %v34, 152
  %v388 = vadd.s32 %v34, 160
  %v389 = vadd.s32 %v34, 168
  %v390 = vadd.s32 %v34, 176
  %v391 = vadd.s32 %v34, 184
  %v392 = vadd.s32 %v34, 192
  %v393 = vadd.s32 %v34, 200
  %v394 = vadd.s32 %v34, 208
  %v395 = vadd.s32 %v34, 216
  %v396 = vadd.s32 %v34, 224
  %v397 = vadd.s32 %v34, 232
  %v398 = vadd.s32 %v34, 240
  %v399 = vadd.s32 %v34, 248
  %v400 = vadd.s32 %v131, 128
  %vm401 = vcmp.lt.s32.totalorder %v118, 0
  %v402 = vsub.s32 0, %v118
  %v403 = vsel %vm401, %v402, %v118
  %v404 = vshrl.u32 %v403, 4
  %v405 = vand.u32 %v403, 15
  %v406 = vsub.s32 0, %v405
  %v407 = vsel %vm401, %v406, %v405
  %vm408 = vcmp.lt.s32.totalorder %v119, 0
  %v409 = vsub.s32 0, %v119
  %v410 = vsel %vm408, %v409, %v119
  %v411 = vshrl.u32 %v410, 4
  %v412 = vand.u32 %v410, 15
  %v413 = vsub.s32 0, %v412
  %v414 = vsel %vm408, %v413, %v412
  %vm415 = vcmp.lt.s32.totalorder %v120, 0
  %v416 = vsub.s32 0, %v120
  %v417 = vsel %vm415, %v416, %v120
  %v418 = vshrl.u32 %v417, 4
  %v419 = vand.u32 %v417, 15
  %v420 = vsub.s32 0, %v419
  %v421 = vsel %vm415, %v420, %v419
  %vm422 = vcmp.lt.s32.totalorder %v121, 0
  %v423 = vsub.s32 0, %v121
  %v424 = vsel %vm422, %v423, %v121
  %v425 = vshrl.u32 %v424, 4
  %v426 = vand.u32 %v424, 15
  %v427 = vsub.s32 0, %v426
  %v428 = vsel %vm422, %v427, %v426
  %vm429 = vcmp.lt.s32.totalorder %v122, 0
  %v430 = vsub.s32 0, %v122
  %v431 = vsel %vm429, %v430, %v122
  %v432 = vshrl.u32 %v431, 4
  %v433 = vand.u32 %v431, 15
  %v434 = vsub.s32 0, %v433
  %v435 = vsel %vm429, %v434, %v433
  %vm436 = vcmp.lt.s32.totalorder %v123, 0
  %v437 = vsub.s32 0, %v123
  %v438 = vsel %vm436, %v437, %v123
  %v439 = vshrl.u32 %v438, 4
  %v440 = vand.u32 %v438, 15
  %v441 = vsub.s32 0, %v440
  %v442 = vsel %vm436, %v441, %v440
  %vm443 = vcmp.lt.s32.totalorder %v124, 0
  %v444 = vsub.s32 0, %v124
  %v445 = vsel %vm443, %v444, %v124
  %v446 = vshrl.u32 %v445, 4
  %v447 = vand.u32 %v445, 15
  %v448 = vsub.s32 0, %v447
  %v449 = vsel %vm443, %v448, %v447
  %vm450 = vcmp.lt.s32.totalorder %v125, 0
  %v451 = vsub.s32 0, %v125
  %v452 = vsel %vm450, %v451, %v125
  %v453 = vshrl.u32 %v452, 4
  %v454 = vand.u32 %v452, 15
  %v455 = vsub.s32 0, %v454
  %v456 = vsel %vm450, %v455, %v454
  %vm457 = vcmp.lt.s32.totalorder %v126, 0
  %v458 = vsub.s32 0, %v126
  %v459 = vsel %vm457, %v458, %v126
  %v460 = vshrl.u32 %v459, 4
  %v461 = vand.u32 %v459, 15
  %v462 = vsub.s32 0, %v461
  %v463 = vsel %vm457, %v462, %v461
  %vm464 = vcmp.lt.s32.totalorder %v127, 0
  %v465 = vsub.s32 0, %v127
  %v466 = vsel %vm464, %v465, %v127
  %v467 = vshrl.u32 %v466, 4
  %v468 = vand.u32 %v466, 15
  %v469 = vsub.s32 0, %v468
  %v470 = vsel %vm464, %v469, %v468
  %vm471 = vcmp.lt.s32.totalorder %v128, 0
  %v472 = vsub.s32 0, %v128
  %v473 = vsel %vm471, %v472, %v128
  %v474 = vshrl.u32 %v473, 4
  %v475 = vand.u32 %v473, 15
  %v476 = vsub.s32 0, %v475
  %v477 = vsel %vm471, %v476, %v475
  %vm478 = vcmp.lt.s32.totalorder %v129, 0
  %v479 = vsub.s32 0, %v129
  %v480 = vsel %vm478, %v479, %v129
  %v481 = vshrl.u32 %v480, 4
  %v482 = vand.u32 %v480, 15
  %v483 = vsub.s32 0, %v482
  %v484 = vsel %vm478, %v483, %v482
  %vm485 = vcmp.lt.s32.totalorder %v384, 0
  %v486 = vsub.s32 0, %v384
  %v487 = vsel %vm485, %v486, %v384
  %v488 = vshrl.u32 %v487, 4
  %v489 = vand.u32 %v487, 15
  %v490 = vsub.s32 0, %v489
  %v491 = vsel %vm485, %v490, %v489
  %vm492 = vcmp.lt.s32.totalorder %v385, 0
  %v493 = vsub.s32 0, %v385
  %v494 = vsel %vm492, %v493, %v385
  %v495 = vshrl.u32 %v494, 4
  %v496 = vand.u32 %v494, 15
  %v497 = vsub.s32 0, %v496
  %v498 = vsel %vm492, %v497, %v496
  %vm499 = vcmp.lt.s32.totalorder %v386, 0
  %v500 = vsub.s32 0, %v386
  %v501 = vsel %vm499, %v500, %v386
  %v502 = vshrl.u32 %v501, 4
  %v503 = vand.u32 %v501, 15
  %v504 = vsub.s32 0, %v503
  %v505 = vsel %vm499, %v504, %v503
  %vm506 = vcmp.lt.s32.totalorder %v387, 0
  %v507 = vsub.s32 0, %v387
  %v508 = vsel %vm506, %v507, %v387
  %v509 = vshrl.u32 %v508, 4
  %v510 = vand.u32 %v508, 15
  %v511 = vsub.s32 0, %v510
  %v512 = vsel %vm506, %v511, %v510
  %vm513 = vcmp.lt.s32.totalorder %v388, 0
  %v514 = vsub.s32 0, %v388
  %v515 = vsel %vm513, %v514, %v388
  %v516 = vshrl.u32 %v515, 4
  %v517 = vand.u32 %v515, 15
  %v518 = vsub.s32 0, %v517
  %v519 = vsel %vm513, %v518, %v517
  %vm520 = vcmp.lt.s32.totalorder %v389, 0
  %v521 = vsub.s32 0, %v389
  %v522 = vsel %vm520, %v521, %v389
  %v523 = vshrl.u32 %v522, 4
  %v524 = vand.u32 %v522, 15
  %v525 = vsub.s32 0, %v524
  %v526 = vsel %vm520, %v525, %v524
  %vm527 = vcmp.lt.s32.totalorder %v390, 0
  %v528 = vsub.s32 0, %v390
  %v529 = vsel %vm527, %v528, %v390
  %v530 = vshrl.u32 %v529, 4
  %v531 = vand.u32 %v529, 15
  %v532 = vsub.s32 0, %v531
  %v533 = vsel %vm527, %v532, %v531
  %vm534 = vcmp.lt.s32.totalorder %v391, 0
  %v535 = vsub.s32 0, %v391
  %v536 = vsel %vm534, %v535, %v391
  %v537 = vshrl.u32 %v536, 4
  %v538 = vand.u32 %v536, 15
  %v539 = vsub.s32 0, %v538
  %v540 = vsel %vm534, %v539, %v538
  %vm541 = vcmp.lt.s32.totalorder %v392, 0
  %v542 = vsub.s32 0, %v392
  %v543 = vsel %vm541, %v542, %v392
  %v544 = vshrl.u32 %v543, 4
  %v545 = vand.u32 %v543, 15
  %v546 = vsub.s32 0, %v545
  %v547 = vsel %vm541, %v546, %v545
  %vm548 = vcmp.lt.s32.totalorder %v393, 0
  %v549 = vsub.s32 0, %v393
  %v550 = vsel %vm548, %v549, %v393
  %v551 = vshrl.u32 %v550, 4
  %v552 = vand.u32 %v550, 15
  %v553 = vsub.s32 0, %v552
  %v554 = vsel %vm548, %v553, %v552
  %vm555 = vcmp.lt.s32.totalorder %v394, 0
  %v556 = vsub.s32 0, %v394
  %v557 = vsel %vm555, %v556, %v394
  %v558 = vshrl.u32 %v557, 4
  %v559 = vand.u32 %v557, 15
  %v560 = vsub.s32 0, %v559
  %v561 = vsel %vm555, %v560, %v559
  %vm562 = vcmp.lt.s32.totalorder %v395, 0
  %v563 = vsub.s32 0, %v395
  %v564 = vsel %vm562, %v563, %v395
  %v565 = vshrl.u32 %v564, 4
  %v566 = vand.u32 %v564, 15
  %v567 = vsub.s32 0, %v566
  %v568 = vsel %vm562, %v567, %v566
  %vm569 = vcmp.lt.s32.totalorder %v396, 0
  %v570 = vsub.s32 0, %v396
  %v571 = vsel %vm569, %v570, %v396
  %v572 = vshrl.u32 %v571, 4
  %v573 = vand.u32 %v571, 15
  %v574 = vsub.s32 0, %v573
  %v575 = vsel %vm569, %v574, %v573
  %vm576 = vcmp.lt.s32.totalorder %v397, 0
  %v577 = vsub.s32 0, %v397
  %v578 = vsel %vm576, %v577, %v397
  %v579 = vshrl.u32 %v578, 4
  %v580 = vand.u32 %v578, 15
  %v581 = vsub.s32 0, %v580
  %v582 = vsel %vm576, %v581, %v580
  %vm583 = vcmp.lt.s32.totalorder %v398, 0
  %v584 = vsub.s32 0, %v398
  %v585 = vsel %vm583, %v584, %v398
  %v586 = vshrl.u32 %v585, 4
  %v587 = vand.u32 %v585, 15
  %v588 = vsub.s32 0, %v587
  %v589 = vsel %vm583, %v588, %v587
  %vm590 = vcmp.lt.s32.totalorder %v399, 0
  %v591 = vsub.s32 0, %v399
  %v592 = vsel %vm590, %v591, %v399
  %v593 = vshrl.u32 %v592, 4
  %v594 = vand.u32 %v592, 15
  %v595 = vsub.s32 0, %v594
  %v596 = vsel %vm590, %v595, %v594
  %vm597 = vcmp.ne.s32.totalorder %v407, 0
  %vm598 = vcmp.ne.s32.totalorder %v414, 0
  %vm599 = vcmp.ne.s32.totalorder %v421, 0
  %vm600 = vcmp.ne.s32.totalorder %v428, 0
  %vm601 = vcmp.ne.s32.totalorder %v435, 0
  %vm602 = vcmp.ne.s32.totalorder %v442, 0
  %vm603 = vcmp.ne.s32.totalorder %v449, 0
  %vm604 = vcmp.ne.s32.totalorder %v456, 0
  %vm605 = vcmp.ne.s32.totalorder %v463, 0
  %vm606 = vcmp.ne.s32.totalorder %v470, 0
  %vm607 = vcmp.ne.s32.totalorder %v477, 0
  %vm608 = vcmp.ne.s32.totalorder %v484, 0
  %vm609 = vcmp.ne.s32.totalorder %v491, 0
  %vm610 = vcmp.ne.s32.totalorder %v498, 0
  %vm611 = vcmp.ne.s32.totalorder %v505, 0
  %vm612 = vcmp.ne.s32.totalorder %v512, 0
  %vm613 = vcmp.ne.s32.totalorder %v519, 0
  %vm614 = vcmp.ne.s32.totalorder %v526, 0
  %vm615 = vcmp.ne.s32.totalorder %v533, 0
  %vm616 = vcmp.ne.s32.totalorder %v540, 0
  %vm617 = vcmp.ne.s32.totalorder %v547, 0
  %vm618 = vcmp.ne.s32.totalorder %v554, 0
  %vm619 = vcmp.ne.s32.totalorder %v561, 0
  %vm620 = vcmp.ne.s32.totalorder %v568, 0
  %vm621 = vcmp.ne.s32.totalorder %v575, 0
  %vm622 = vcmp.ne.s32.totalorder %v582, 0
  %vm623 = vcmp.ne.s32.totalorder %v589, 0
  %vm624 = vcmp.ne.s32.totalorder %v596, 0
  %vm625 = vcmp.lt.s32.totalorder %v407, 0
  %vm626 = vcmp.lt.s32.totalorder %v414, 0
  %vm627 = vcmp.lt.s32.totalorder %v421, 0
  %vm628 = vcmp.lt.s32.totalorder %v428, 0
  %vm629 = vcmp.lt.s32.totalorder %v435, 0
  %vm630 = vcmp.lt.s32.totalorder %v442, 0
  %vm631 = vcmp.lt.s32.totalorder %v449, 0
  %vm632 = vcmp.lt.s32.totalorder %v456, 0
  %vm633 = vcmp.lt.s32.totalorder %v463, 0
  %vm634 = vcmp.lt.s32.totalorder %v470, 0
  %vm635 = vcmp.lt.s32.totalorder %v477, 0
  %vm636 = vcmp.lt.s32.totalorder %v484, 0
  %vm637 = vcmp.lt.s32.totalorder %v491, 0
  %vm638 = vcmp.lt.s32.totalorder %v498, 0
  %vm639 = vcmp.lt.s32.totalorder %v505, 0
  %vm640 = vcmp.lt.s32.totalorder %v512, 0
  %vm641 = vcmp.lt.s32.totalorder %v519, 0
  %vm642 = vcmp.lt.s32.totalorder %v526, 0
  %vm643 = vcmp.lt.s32.totalorder %v533, 0
  %vm644 = vcmp.lt.s32.totalorder %v540, 0
  %vm645 = vcmp.lt.s32.totalorder %v547, 0
  %vm646 = vcmp.lt.s32.totalorder %v554, 0
  %vm647 = vcmp.lt.s32.totalorder %v561, 0
  %vm648 = vcmp.lt.s32.totalorder %v568, 0
  %vm649 = vcmp.lt.s32.totalorder %v575, 0
  %vm650 = vcmp.lt.s32.totalorder %v582, 0
  %vm651 = vcmp.lt.s32.totalorder %v589, 0
  %vm652 = vcmp.lt.s32.totalorder %v596, 0
  %vm653 = vmand %vm625, %vm597
  %vm654 = vmand %vm626, %vm598
  %vm655 = vmand %vm627, %vm599
  %vm656 = vmand %vm628, %vm600
  %vm657 = vmand %vm629, %vm601
  %vm658 = vmand %vm630, %vm602
  %vm659 = vmand %vm631, %vm603
  %vm660 = vmand %vm632, %vm604
  %vm661 = vmand %vm633, %vm605
  %vm662 = vmand %vm634, %vm606
  %vm663 = vmand %vm635, %vm607
  %vm664 = vmand %vm636, %vm608
  %vm665 = vmand %vm637, %vm609
  %vm666 = vmand %vm638, %vm610
  %vm667 = vmand %vm639, %vm611
  %vm668 = vmand %vm640, %vm612
  %vm669 = vmand %vm641, %vm613
  %vm670 = vmand %vm642, %vm614
  %vm671 = vmand %vm643, %vm615
  %vm672 = vmand %vm644, %vm616
  %vm673 = vmand %vm645, %vm617
  %vm674 = vmand %vm646, %vm618
  %vm675 = vmand %vm647, %vm619
  %vm676 = vmand %vm648, %vm620
  %vm677 = vmand %vm649, %vm621
  %vm678 = vmand %vm650, %vm622
  %vm679 = vmand %vm651, %vm623
  %vm680 = vmand %vm652, %vm624
  %v681 = vadd.s32 %v407, 16
  %v682 = vadd.s32 %v414, 16
  %v683 = vadd.s32 %v421, 16
  %v684 = vadd.s32 %v428, 16
  %v685 = vadd.s32 %v435, 16
  %v686 = vadd.s32 %v442, 16
  %v687 = vadd.s32 %v449, 16
  %v688 = vadd.s32 %v456, 16
  %v689 = vadd.s32 %v463, 16
  %v690 = vadd.s32 %v470, 16
  %v691 = vadd.s32 %v477, 16
  %v692 = vadd.s32 %v484, 16
  %v693 = vadd.s32 %v491, 16
  %v694 = vadd.s32 %v498, 16
  %v695 = vadd.s32 %v505, 16
  %v696 = vadd.s32 %v512, 16
  %v697 = vadd.s32 %v519, 16
  %v698 = vadd.s32 %v526, 16
  %v699 = vadd.s32 %v533, 16
  %v700 = vadd.s32 %v540, 16
  %v701 = vadd.s32 %v547, 16
  %v702 = vadd.s32 %v554, 16
  %v703 = vadd.s32 %v561, 16
  %v704 = vadd.s32 %v568, 16
  %v705 = vadd.s32 %v575, 16
  %v706 = vadd.s32 %v582, 16
  %v707 = vadd.s32 %v589, 16
  %v708 = vadd.s32 %v596, 16
  %v709 = vsel %vm653, %v681, %v407
  %v710 = vsel %vm654, %v682, %v414
  %v711 = vsel %vm655, %v683, %v421
  %v712 = vsel %vm656, %v684, %v428
  %v713 = vsel %vm657, %v685, %v435
  %v714 = vsel %vm658, %v686, %v442
  %v715 = vsel %vm659, %v687, %v449
  %v716 = vsel %vm660, %v688, %v456
  %v717 = vsel %vm661, %v689, %v463
  %v718 = vsel %vm662, %v690, %v470
  %v719 = vsel %vm663, %v691, %v477
  %v720 = vsel %vm664, %v692, %v484
  %v721 = vsel %vm665, %v693, %v491
  %v722 = vsel %vm666, %v694, %v498
  %v723 = vsel %vm667, %v695, %v505
  %v724 = vsel %vm668, %v696, %v512
  %v725 = vsel %vm669, %v697, %v519
  %v726 = vsel %vm670, %v698, %v526
  %v727 = vsel %vm671, %v699, %v533
  %v728 = vsel %vm672, %v700, %v540
  %v729 = vsel %vm673, %v701, %v547
  %v730 = vsel %vm674, %v702, %v554
  %v731 = vsel %vm675, %v703, %v561
  %v732 = vsel %vm676, %v704, %v568
  %v733 = vsel %vm677, %v705, %v575
  %v734 = vsel %vm678, %v706, %v582
  %v735 = vsel %vm679, %v707, %v589
  %v736 = vsel %vm680, %v708, %v596
  %vm737 = vcmp.lt.s32.totalorder %v131, 0
  %v738 = vsub.s32 0, %v131
  %v739 = vsel %vm737, %v738, %v131
  %v740 = vshrl.u32 %v739, 4
  %v741 = vand.u32 %v739, 15
  %v742 = vsub.s32 0, %v741
  %v743 = vsel %vm737, %v742, %v741
  %vm744 = vcmp.lt.s32.totalorder %v400, 0
  %v745 = vsub.s32 0, %v400
  %v746 = vsel %vm744, %v745, %v400
  %v747 = vshrl.u32 %v746, 4
  %v748 = vand.u32 %v746, 15
  %v749 = vsub.s32 0, %v748
  %v750 = vsel %vm744, %v749, %v748
  %vm751 = vcmp.ne.s32.totalorder %v743, 0
  %vm752 = vcmp.ne.s32.totalorder %v750, 0
  %vm753 = vcmp.lt.s32.totalorder %v743, 0
  %vm754 = vcmp.lt.s32.totalorder %v750, 0
  %vm755 = vmand %vm753, %vm751
  %vm756 = vmand %vm754, %vm752
  %v757 = vadd.s32 %v743, 16
  %v758 = vadd.s32 %v750, 16
  %v759 = vsel %vm755, %v757, %v743
  %v760 = vsel %vm756, %v758, %v750
  %vm761 = vcmp.eq.s32.totalorder %v82, %v759
  %vm762 = vcmp.eq.s32.totalorder %v82, %v760
  %vm763 = vcmp.eq.s32.totalorder %v83, %v759
  %vm764 = vcmp.eq.s32.totalorder %v83, %v760
  %vm765 = vcmp.eq.s32.totalorder %v84, %v759
  %vm766 = vcmp.eq.s32.totalorder %v84, %v760
  %vm767 = vcmp.eq.s32.totalorder %v85, %v759
  %vm768 = vcmp.eq.s32.totalorder %v85, %v760
  %vm769 = vcmp.eq.s32.totalorder %v709, %v759
  %vm770 = vcmp.eq.s32.totalorder %v709, %v760
  %vm771 = vcmp.eq.s32.totalorder %v710, %v759
  %vm772 = vcmp.eq.s32.totalorder %v710, %v760
  %vm773 = vcmp.eq.s32.totalorder %v711, %v759
  %vm774 = vcmp.eq.s32.totalorder %v711, %v760
  %vm775 = vcmp.eq.s32.totalorder %v712, %v759
  %vm776 = vcmp.eq.s32.totalorder %v712, %v760
  %vm777 = vcmp.eq.s32.totalorder %v713, %v759
  %vm778 = vcmp.eq.s32.totalorder %v713, %v760
  %vm779 = vcmp.eq.s32.totalorder %v714, %v759
  %vm780 = vcmp.eq.s32.totalorder %v714, %v760
  %vm781 = vcmp.eq.s32.totalorder %v715, %v759
  %vm782 = vcmp.eq.s32.totalorder %v715, %v760
  %vm783 = vcmp.eq.s32.totalorder %v716, %v759
  %vm784 = vcmp.eq.s32.totalorder %v716, %v760
  %vm785 = vcmp.eq.s32.totalorder %v717, %v759
  %vm786 = vcmp.eq.s32.totalorder %v717, %v760
  %vm787 = vcmp.eq.s32.totalorder %v718, %v759
  %vm788 = vcmp.eq.s32.totalorder %v718, %v760
  %vm789 = vcmp.eq.s32.totalorder %v719, %v759
  %vm790 = vcmp.eq.s32.totalorder %v719, %v760
  %vm791 = vcmp.eq.s32.totalorder %v720, %v759
  %vm792 = vcmp.eq.s32.totalorder %v720, %v760
  %vm793 = vcmp.eq.s32.totalorder %v721, %v759
  %vm794 = vcmp.eq.s32.totalorder %v721, %v760
  %vm795 = vcmp.eq.s32.totalorder %v722, %v759
  %vm796 = vcmp.eq.s32.totalorder %v722, %v760
  %vm797 = vcmp.eq.s32.totalorder %v723, %v759
  %vm798 = vcmp.eq.s32.totalorder %v723, %v760
  %vm799 = vcmp.eq.s32.totalorder %v724, %v759
  %vm800 = vcmp.eq.s32.totalorder %v724, %v760
  %vm801 = vcmp.eq.s32.totalorder %v725, %v759
  %vm802 = vcmp.eq.s32.totalorder %v725, %v760
  %vm803 = vcmp.eq.s32.totalorder %v726, %v759
  %vm804 = vcmp.eq.s32.totalorder %v726, %v760
  %vm805 = vcmp.eq.s32.totalorder %v727, %v759
  %vm806 = vcmp.eq.s32.totalorder %v727, %v760
  %vm807 = vcmp.eq.s32.totalorder %v728, %v759
  %vm808 = vcmp.eq.s32.totalorder %v728, %v760
  %vm809 = vcmp.eq.s32.totalorder %v729, %v759
  %vm810 = vcmp.eq.s32.totalorder %v729, %v760
  %vm811 = vcmp.eq.s32.totalorder %v730, %v759
  %vm812 = vcmp.eq.s32.totalorder %v730, %v760
  %vm813 = vcmp.eq.s32.totalorder %v731, %v759
  %vm814 = vcmp.eq.s32.totalorder %v731, %v760
  %vm815 = vcmp.eq.s32.totalorder %v732, %v759
  %vm816 = vcmp.eq.s32.totalorder %v732, %v760
  %vm817 = vcmp.eq.s32.totalorder %v733, %v759
  %vm818 = vcmp.eq.s32.totalorder %v733, %v760
  %vm819 = vcmp.eq.s32.totalorder %v734, %v759
  %vm820 = vcmp.eq.s32.totalorder %v734, %v760
  %vm821 = vcmp.eq.s32.totalorder %v735, %v759
  %vm822 = vcmp.eq.s32.totalorder %v735, %v760
  %vm823 = vcmp.eq.s32.totalorder %v736, %v759
  %vm824 = vcmp.eq.s32.totalorder %v736, %v760
  %v825 = vsel %vm761, 1, 0
  %v826 = vsel %vm762, 1, 0
  %v827 = vsel %vm763, 1, 0
  %v828 = vsel %vm764, 1, 0
  %v829 = vsel %vm765, 1, 0
  %v830 = vsel %vm766, 1, 0
  %v831 = vsel %vm767, 1, 0
  %v832 = vsel %vm768, 1, 0
  %v833 = vsel %vm769, 1, 0
  %v834 = vsel %vm770, 1, 0
  %v835 = vsel %vm771, 1, 0
  %v836 = vsel %vm772, 1, 0
  %v837 = vsel %vm773, 1, 0
  %v838 = vsel %vm774, 1, 0
  %v839 = vsel %vm775, 1, 0
  %v840 = vsel %vm776, 1, 0
  %v841 = vsel %vm777, 1, 0
  %v842 = vsel %vm778, 1, 0
  %v843 = vsel %vm779, 1, 0
  %v844 = vsel %vm780, 1, 0
  %v845 = vsel %vm781, 1, 0
  %v846 = vsel %vm782, 1, 0
  %v847 = vsel %vm783, 1, 0
  %v848 = vsel %vm784, 1, 0
  %v849 = vsel %vm785, 1, 0
  %v850 = vsel %vm786, 1, 0
  %v851 = vsel %vm787, 1, 0
  %v852 = vsel %vm788, 1, 0
  %v853 = vsel %vm789, 1, 0
  %v854 = vsel %vm790, 1, 0
  %v855 = vsel %vm791, 1, 0
  %v856 = vsel %vm792, 1, 0
  %v857 = vsel %vm793, 1, 0
  %v858 = vsel %vm794, 1, 0
  %v859 = vsel %vm795, 1, 0
  %v860 = vsel %vm796, 1, 0
  %v861 = vsel %vm797, 1, 0
  %v862 = vsel %vm798, 1, 0
  %v863 = vsel %vm799, 1, 0
  %v864 = vsel %vm800, 1, 0
  %v865 = vsel %vm801, 1, 0
  %v866 = vsel %vm802, 1, 0
  %v867 = vsel %vm803, 1, 0
  %v868 = vsel %vm804, 1, 0
  %v869 = vsel %vm805, 1, 0
  %v870 = vsel %vm806, 1, 0
  %v871 = vsel %vm807, 1, 0
  %v872 = vsel %vm808, 1, 0
  %v873 = vsel %vm809, 1, 0
  %v874 = vsel %vm810, 1, 0
  %v875 = vsel %vm811, 1, 0
  %v876 = vsel %vm812, 1, 0
  %v877 = vsel %vm813, 1, 0
  %v878 = vsel %vm814, 1, 0
  %v879 = vsel %vm815, 1, 0
  %v880 = vsel %vm816, 1, 0
  %v881 = vsel %vm817, 1, 0
  %v882 = vsel %vm818, 1, 0
  %v883 = vsel %vm819, 1, 0
  %v884 = vsel %vm820, 1, 0
  %v885 = vsel %vm821, 1, 0
  %v886 = vsel %vm822, 1, 0
  %v887 = vsel %vm823, 1, 0
  %v888 = vsel %vm824, 1, 0
  %v889 = vcvt.s32.f32 %v825
  %v890 = vcvt.s32.f32 %v826
  %v891 = vcvt.s32.f32 %v827
  %v892 = vcvt.s32.f32 %v828
  %v893 = vcvt.s32.f32 %v829
  %v894 = vcvt.s32.f32 %v830
  %v895 = vcvt.s32.f32 %v831
  %v896 = vcvt.s32.f32 %v832
  %v897 = vcvt.s32.f32 %v833
  %v898 = vcvt.s32.f32 %v834
  %v899 = vcvt.s32.f32 %v835
  %v900 = vcvt.s32.f32 %v836
  %v901 = vcvt.s32.f32 %v837
  %v902 = vcvt.s32.f32 %v838
  %v903 = vcvt.s32.f32 %v839
  %v904 = vcvt.s32.f32 %v840
  %v905 = vcvt.s32.f32 %v841
  %v906 = vcvt.s32.f32 %v842
  %v907 = vcvt.s32.f32 %v843
  %v908 = vcvt.s32.f32 %v844
  %v909 = vcvt.s32.f32 %v845
  %v910 = vcvt.s32.f32 %v846
  %v911 = vcvt.s32.f32 %v847
  %v912 = vcvt.s32.f32 %v848
  %v913 = vcvt.s32.f32 %v849
  %v914 = vcvt.s32.f32 %v850
  %v915 = vcvt.s32.f32 %v851
  %v916 = vcvt.s32.f32 %v852
  %v917 = vcvt.s32.f32 %v853
  %v918 = vcvt.s32.f32 %v854
  %v919 = vcvt.s32.f32 %v855
  %v920 = vcvt.s32.f32 %v856
  %v921 = vcvt.s32.f32 %v857
  %v922 = vcvt.s32.f32 %v858
  %v923 = vcvt.s32.f32 %v859
  %v924 = vcvt.s32.f32 %v860
  %v925 = vcvt.s32.f32 %v861
  %v926 = vcvt.s32.f32 %v862
  %v927 = vcvt.s32.f32 %v863
  %v928 = vcvt.s32.f32 %v864
  %v929 = vcvt.s32.f32 %v865
  %v930 = vcvt.s32.f32 %v866
  %v931 = vcvt.s32.f32 %v867
  %v932 = vcvt.s32.f32 %v868
  %v933 = vcvt.s32.f32 %v869
  %v934 = vcvt.s32.f32 %v870
  %v935 = vcvt.s32.f32 %v871
  %v936 = vcvt.s32.f32 %v872
  %v937 = vcvt.s32.f32 %v873
  %v938 = vcvt.s32.f32 %v874
  %v939 = vcvt.s32.f32 %v875
  %v940 = vcvt.s32.f32 %v876
  %v941 = vcvt.s32.f32 %v877
  %v942 = vcvt.s32.f32 %v878
  %v943 = vcvt.s32.f32 %v879
  %v944 = vcvt.s32.f32 %v880
  %v945 = vcvt.s32.f32 %v881
  %v946 = vcvt.s32.f32 %v882
  %v947 = vcvt.s32.f32 %v883
  %v948 = vcvt.s32.f32 %v884
  %v949 = vcvt.s32.f32 %v885
  %v950 = vcvt.s32.f32 %v886
  %v951 = vcvt.s32.f32 %v887
  %v952 = vcvt.s32.f32 %v888
  %v953 = vld [vmem:[%s0] sm:$0xff]
  %v954 = vld [vmem:[%s0 + $0x8] sm:$0xff]
  %v955 = vld [vmem:[%s0 + $0x10] sm:$0xff]
  %v956 = vld [vmem:[%s0 + $0x18] sm:$0xff]
  %v957 = vmax.f32 %v953, 0.0
  %v958 = vmax.f32 %v954, 0.0
  %v959 = vmax.f32 %v955, 0.0
  %v960 = vmax.f32 %v956, 0.0
  %v961 = vld [vmem:[%s1] sm:$0xff]
  %v962 = vld [vmem:[%s1 + $0x8] sm:$0x1]
  %vm967 = vcmask 1040384
  %v968 = vrot.slane %v957, 7
  %v969 = vrot.slane %v958, 7
  %v970 = vsel %vm967, %v968, %v969
  %v971 = vrot.slane %v959, 7
  %v972 = vsel %vm967, %v969, %v971
  %v973 = vrot.slane %v960, 7
  %v974 = vsel %vm967, %v971, %v973
  %v979 = vsel %vm967, 0.0, %v968
  %v980 = vsel %vm98, 1, 0
  %v981 = vsel %vm99, 1, 0
  %v982 = vsel %vm100, 1, 0
  %v983 = vsel %vm101, 1, 0
  %vm984 = vcmp.eq.s32.totalorder %v980, 1
  %vm985 = vcmp.eq.s32.totalorder %v981, 1
  %vm986 = vcmp.eq.s32.totalorder %v982, 1
  %vm987 = vcmp.eq.s32.totalorder %v983, 1
  %v988 = vsel %vm984, %v979, 0.0
  %v989 = vsel %vm985, %v970, 0.0
  %v990 = vsel %vm986, %v972, 0.0
  %v991 = vsel %vm987, %v974, 0.0
  %996 = vrot.lane.b32.xlu0 %v988, 8
  %v997 = vpop.permute.xlu0 %996
  %998 = vrot.lane.b32.xlu0 %v989, 8
  %v999 = vpop.permute.xlu0 %998
  %1000 = vrot.lane.b32.xlu0 %v990, 8
  %v1001 = vpop.permute.xlu0 %1000
  %1002 = vrot.lane.b32.xlu0 %v991, 8
  %v1003 = vpop.permute.xlu0 %1002
  %vm1008 = vcmask 64512
  %v1009 = vsel %vm1008, 0.0, %v997
  %v1010 = vsel %vm1008, 0.0, %v999
  %v1011 = vsel %vm1008, 0.0, %v1001
  %v1012 = vsel %vm1008, 0.0, %v1003
  %v1013 = vlaneseq
  %v1014 = vshrl.u32 %v1013, 7
  %v1015 = vsub.s32 0, %v1014
  %v1016 = vrot.slane %v961, %v1015
  %v1017 = vmul.f32 %v1009, %v1016
  %v1018 = vmul.f32 %v1010, %v1016
  %v1019 = vmul.f32 %v1011, %v1016
  %v1020 = vmul.f32 %v1012, %v1016
  %v1021 = vlaneseq
  %v1022 = vshrl.u32 %v1021, 7
  %v1023 = vsub.s32 1, %v1022
  %v1024 = vrot.slane %v961, %v1023
  %v1025 = vmul.f32 %v988, %v1024
  %v1026 = vmul.f32 %v989, %v1024
  %v1027 = vmul.f32 %v990, %v1024
  %v1028 = vmul.f32 %v991, %v1024
  %v1029 = vadd.f32 %v1017, %v1025
  %v1030 = vadd.f32 %v1018, %v1026
  %v1031 = vadd.f32 %v1019, %v1027
  %v1032 = vadd.f32 %v1020, %v1028
  %1033 = vrot.lane.b32.xlu0 %v988, 120
  %v1034 = vpop.permute.xlu0 %1033
  %1035 = vrot.lane.b32.xlu0 %v989, 120
  %v1036 = vpop.permute.xlu0 %1035
  %1037 = vrot.lane.b32.xlu0 %v990, 120
  %v1038 = vpop.permute.xlu0 %1037
  %1039 = vrot.lane.b32.xlu0 %v991, 120
  %v1040 = vpop.permute.xlu0 %1039
  %vm1045 = vcmask 982016
  %v1046 = vsel %vm1045, %v1034, 0.0
  %v1047 = vsel %vm1045, %v1036, 0.0
  %v1048 = vsel %vm1045, %v1038, 0.0
  %v1049 = vsel %vm1045, %v1040, 0.0
  %v1050 = vlaneseq
  %v1051 = vshrl.u32 %v1050, 7
  %v1052 = vsub.s32 2, %v1051
  %v1053 = vrot.slane %v961, %v1052
  %v1054 = vmul.f32 %v1046, %v1053
  %v1055 = vmul.f32 %v1047, %v1053
  %v1056 = vmul.f32 %v1048, %v1053
  %v1057 = vmul.f32 %v1049, %v1053
  %v1058 = vadd.f32 %v1029, %v1054
  %v1059 = vadd.f32 %v1030, %v1055
  %v1060 = vadd.f32 %v1031, %v1056
  %v1061 = vadd.f32 %v1032, %v1057
  %1062 = vrot.lane.b32.xlu0 %v957, 8
  %v1063 = vpop.permute.xlu0 %1062
  %1064 = vrot.lane.b32.xlu0 %v958, 8
  %v1065 = vpop.permute.xlu0 %1064
  %1066 = vrot.lane.b32.xlu0 %v959, 8
  %v1067 = vpop.permute.xlu0 %1066
  %1068 = vrot.lane.b32.xlu0 %v960, 8
  %v1069 = vpop.permute.xlu0 %1068
  %v1074 = vsel %vm1008, 0.0, %v1063
  %v1075 = vsel %vm1008, 0.0, %v1065
  %v1076 = vsel %vm1008, 0.0, %v1067
  %v1077 = vsel %vm1008, 0.0, %v1069
  %v1078 = vlaneseq
  %v1079 = vshrl.u32 %v1078, 7
  %v1080 = vsub.s32 3, %v1079
  %v1081 = vrot.slane %v961, %v1080
  %v1082 = vmul.f32 %v1074, %v1081
  %v1083 = vmul.f32 %v1075, %v1081
  %v1084 = vmul.f32 %v1076, %v1081
  %v1085 = vmul.f32 %v1077, %v1081
  %v1086 = vadd.f32 %v1058, %v1082
  %v1087 = vadd.f32 %v1059, %v1083
  %v1088 = vadd.f32 %v1060, %v1084
  %v1089 = vadd.f32 %v1061, %v1085
  %v1090 = vlaneseq
  %v1091 = vshrl.u32 %v1090, 7
  %v1092 = vsub.s32 4, %v1091
  %v1093 = vrot.slane %v961, %v1092
  %v1094 = vmul.f32 %v957, %v1093
  %v1095 = vmul.f32 %v958, %v1093
  %v1096 = vmul.f32 %v959, %v1093
  %v1097 = vmul.f32 %v960, %v1093
  %v1098 = vadd.f32 %v1086, %v1094
  %v1099 = vadd.f32 %v1087, %v1095
  %v1100 = vadd.f32 %v1088, %v1096
  %v1101 = vadd.f32 %v1089, %v1097
  %1102 = vrot.lane.b32.xlu0 %v957, 120
  %v1103 = vpop.permute.xlu0 %1102
  %1104 = vrot.lane.b32.xlu0 %v958, 120
  %v1105 = vpop.permute.xlu0 %1104
  %1106 = vrot.lane.b32.xlu0 %v959, 120
  %v1107 = vpop.permute.xlu0 %1106
  %1108 = vrot.lane.b32.xlu0 %v960, 120
  %v1109 = vpop.permute.xlu0 %1108
  %v1114 = vsel %vm1045, %v1103, 0.0
  %v1115 = vsel %vm1045, %v1105, 0.0
  %v1116 = vsel %vm1045, %v1107, 0.0
  %v1117 = vsel %vm1045, %v1109, 0.0
  %v1118 = vlaneseq
  %v1119 = vshrl.u32 %v1118, 7
  %v1120 = vsub.s32 5, %v1119
  %v1121 = vrot.slane %v961, %v1120
  %v1122 = vmul.f32 %v1114, %v1121
  %v1123 = vmul.f32 %v1115, %v1121
  %v1124 = vmul.f32 %v1116, %v1121
  %v1125 = vmul.f32 %v1117, %v1121
  %v1126 = vadd.f32 %v1098, %v1122
  %v1127 = vadd.f32 %v1099, %v1123
  %v1128 = vadd.f32 %v1100, %v1124
  %v1129 = vadd.f32 %v1101, %v1125
  %vm1130 = vcmask 1046528
  %v1131 = vrot.slane %v957, 1
  %v1132 = vrot.slane %v958, 1
  %v1133 = vsel %vm1130, %v1131, %v1132
  %v1134 = vrot.slane %v959, 1
  %v1135 = vsel %vm1130, %v1132, %v1134
  %v1136 = vrot.slane %v960, 1
  %v1137 = vsel %vm1130, %v1134, %v1136
  %v1142 = vsel %vm1130, %v1136, 0.0
  %v1143 = vsel %vm114, 1, 0
  %v1144 = vsel %vm115, 1, 0
  %v1145 = vsel %vm116, 1, 0
  %v1146 = vsel %vm117, 1, 0
  %vm1147 = vcmp.eq.s32.totalorder %v1143, 1
  %vm1148 = vcmp.eq.s32.totalorder %v1144, 1
  %vm1149 = vcmp.eq.s32.totalorder %v1145, 1
  %vm1150 = vcmp.eq.s32.totalorder %v1146, 1
  %v1151 = vsel %vm1147, %v1133, 0.0
  %v1152 = vsel %vm1148, %v1135, 0.0
  %v1153 = vsel %vm1149, %v1137, 0.0
  %v1154 = vsel %vm1150, %v1142, 0.0
  %1159 = vrot.lane.b32.xlu0 %v1151, 8
  %v1160 = vpop.permute.xlu0 %1159
  %1161 = vrot.lane.b32.xlu0 %v1152, 8
  %v1162 = vpop.permute.xlu0 %1161
  %1163 = vrot.lane.b32.xlu0 %v1153, 8
  %v1164 = vpop.permute.xlu0 %1163
  %1165 = vrot.lane.b32.xlu0 %v1154, 8
  %v1166 = vpop.permute.xlu0 %1165
  %v1171 = vsel %vm1008, 0.0, %v1160
  %v1172 = vsel %vm1008, 0.0, %v1162
  %v1173 = vsel %vm1008, 0.0, %v1164
  %v1174 = vsel %vm1008, 0.0, %v1166
  %v1175 = vlaneseq
  %v1176 = vshrl.u32 %v1175, 7
  %v1177 = vsub.s32 6, %v1176
  %v1178 = vrot.slane %v961, %v1177
  %v1179 = vmul.f32 %v1171, %v1178
  %v1180 = vmul.f32 %v1172, %v1178
  %v1181 = vmul.f32 %v1173, %v1178
  %v1182 = vmul.f32 %v1174, %v1178
  %v1183 = vadd.f32 %v1126, %v1179
  %v1184 = vadd.f32 %v1127, %v1180
  %v1185 = vadd.f32 %v1128, %v1181
  %v1186 = vadd.f32 %v1129, %v1182
  %v1187 = vlaneseq
  %v1188 = vshrl.u32 %v1187, 7
  %v1189 = vsub.s32 7, %v1188
  %v1190 = vrot.slane %v961, %v1189
  %v1191 = vmul.f32 %v1151, %v1190
  %v1192 = vmul.f32 %v1152, %v1190
  %v1193 = vmul.f32 %v1153, %v1190
  %v1194 = vmul.f32 %v1154, %v1190
  %v1195 = vadd.f32 %v1183, %v1191
  %v1196 = vadd.f32 %v1184, %v1192
  %v1197 = vadd.f32 %v1185, %v1193
  %v1198 = vadd.f32 %v1186, %v1194
  %1199 = vrot.lane.b32.xlu0 %v1151, 120
  %v1200 = vpop.permute.xlu0 %1199
  %1201 = vrot.lane.b32.xlu0 %v1152, 120
  %v1202 = vpop.permute.xlu0 %1201
  %1203 = vrot.lane.b32.xlu0 %v1153, 120
  %v1204 = vpop.permute.xlu0 %1203
  %1205 = vrot.lane.b32.xlu0 %v1154, 120
  %v1206 = vpop.permute.xlu0 %1205
  %v1211 = vsel %vm1045, %v1200, 0.0
  %v1212 = vsel %vm1045, %v1202, 0.0
  %v1213 = vsel %vm1045, %v1204, 0.0
  %v1214 = vsel %vm1045, %v1206, 0.0
  %v1215 = vlaneseq
  %v1216 = vshrl.u32 %v1215, 7
  %v1217 = vsub.s32 0, %v1216
  %v1218 = vrot.slane %v962, %v1217
  %v1219 = vmul.f32 %v1211, %v1218
  %v1220 = vmul.f32 %v1212, %v1218
  %v1221 = vmul.f32 %v1213, %v1218
  %v1222 = vmul.f32 %v1214, %v1218
  %v1223 = vadd.f32 %v1195, %v1219
  %v1224 = vadd.f32 %v1196, %v1220
  %v1225 = vadd.f32 %v1197, %v1221
  %v1226 = vadd.f32 %v1198, %v1222
  %v1227 = vpack.c.bf16 %v1224, %v1223
  %v1228 = vpack.c.bf16 %v1226, %v1225
  %v1229 = vld [vmem:[%s2] sm:$0xf]
  %v1230 = vld [vmem:[%s2 + $0x4] sm:$0xf]
  %v1231 = vld [vmem:[%s2 + $0x8] sm:$0xf]
  %v1232 = vld [vmem:[%s2 + $0xc] sm:$0xf]
  %v1233 = vld [vmem:[%s2 + $0x10] sm:$0xf]
  %v1234 = vld [vmem:[%s2 + $0x14] sm:$0xf]
  %v1235 = vld [vmem:[%s2 + $0x18] sm:$0xf]
  %v1236 = vld [vmem:[%s2 + $0x1c] sm:$0xf]
  %v1237 = vld [vmem:[%s2 + $0x20] sm:$0xf]
  %v1238 = vld [vmem:[%s2 + $0x24] sm:$0xf]
  %v1239 = vld [vmem:[%s2 + $0x28] sm:$0xf]
  %v1240 = vld [vmem:[%s2 + $0x2c] sm:$0xf]
  %v1241 = vld [vmem:[%s2 + $0x30] sm:$0xf]
  %v1242 = vld [vmem:[%s2 + $0x34] sm:$0xf]
  %v1243 = vld [vmem:[%s2 + $0x38] sm:$0xf]
  %v1244 = vld [vmem:[%s2 + $0x3c] sm:$0xf]
  %v1261 = vunpack.c.l.b16 %v1229
  %v1262 = vunpack.c.l.b16 %v1230
  %v1263 = vunpack.c.l.b16 %v1231
  %v1264 = vunpack.c.l.b16 %v1232
  %v1265 = vunpack.c.l.b16 %v1233
  %v1266 = vunpack.c.l.b16 %v1234
  %v1267 = vunpack.c.l.b16 %v1235
  %v1268 = vunpack.c.l.b16 %v1236
  %v1269 = vunpack.c.l.b16 %v1237
  %v1270 = vunpack.c.l.b16 %v1238
  %v1271 = vunpack.c.l.b16 %v1239
  %v1272 = vunpack.c.l.b16 %v1240
  %v1273 = vunpack.c.l.b16 %v1241
  %v1274 = vunpack.c.l.b16 %v1242
  %v1275 = vunpack.c.l.b16 %v1243
  %v1276 = vunpack.c.l.b16 %v1244
  %v1277 = vpack.c.b16 %v1262, %v1261
  %v1278 = vpack.c.b16 %v1264, %v1263
  %v1279 = vpack.c.b16 %v1266, %v1265
  %v1280 = vpack.c.b16 %v1268, %v1267
  %v1281 = vpack.c.b16 %v1270, %v1269
  %v1282 = vpack.c.b16 %v1272, %v1271
  %v1283 = vpack.c.b16 %v1274, %v1273
  %v1284 = vpack.c.b16 %v1276, %v1275
  %1293 = vmatprep.subr.bf16.mxu0 0
  %1294 = vmatpush1.bf16.msra.mxu0 %v1284
  %1295 = vmatprep.subr.bf16.mxu0 0
  %1296 = vmatpush1.bf16.msra.mxu0 %v1283
  %1297 = vmatprep.subr.bf16.mxu0 0
  %1298 = vmatpush1.bf16.msra.mxu0 %v1282
  %1299 = vmatprep.subr.bf16.mxu0 0
  %1300 = vmatpush1.bf16.msra.mxu0 %v1281
  %1301 = vmatprep.subr.bf16.mxu0 0
  %1302 = vmatpush1.bf16.msra.mxu0 %v1280
  %1303 = vmatprep.subr.bf16.mxu0 0
  %1304 = vmatpush1.bf16.msra.mxu0 %v1279
  %1305 = vmatprep.subr.bf16.mxu0 0
  %1306 = vmatpush1.bf16.msra.mxu0 %v1278
  %1307 = vmatprep.subr.bf16.mxu0 0
  %1308 = vmatpush1.bf16.msra.mxu0 %v1277
  %1309 = vmatprep.subr.bf16.mxu0 0
  %1310 = vmatpush2.bf16.msra.mxu0 0
  %1311 = vmatprep.subr.bf16.mxu0 0
  %1312 = vmatpush2.bf16.msra.mxu0 0
  %1313 = vmatprep.subr.bf16.mxu0 0
  %1314 = vmatpush2.bf16.msra.mxu0 0
  %1315 = vmatprep.subr.bf16.mxu0 0
  %1316 = vmatpush2.bf16.msra.mxu0 0
  %1317 = vmatprep.subr.bf16.mxu0 0
  %1318 = vmatpush2.bf16.msra.mxu0 0
  %1319 = vmatprep.subr.bf16.mxu0 0
  %1320 = vmatpush2.bf16.msra.mxu0 0
  %1321 = vmatprep.subr.bf16.mxu0 0
  %1322 = vmatpush2.bf16.msra.mxu0 0
  %1323 = vmatprep.subr.bf16.mxu0 0
  %1324 = vmatpush2.bf16.msra.mxu0 0
  %1325 = vmatprep.mubr.bf16.mxu0 0
  %1326 = vmatmul.mubr.bf16.gmra.mxu0 %v1227
  %v1327 = vpop.f32.mrf.mxu0
  %v1328 = vadd.f32 0.0, %v1327
  %v1329 = vpop.f32.mrf.mxu0
  %v1330 = vpop.f32.mrf.mxu0
  %v1331 = vadd.f32 0.0, %v1330
  %v1332 = vpop.f32.mrf.mxu0
  %1333 = vmatprep.mubr.bf16.mxu0 0
  %1334 = vmatmul.mubr.bf16.gmra.mxu0 %v1228
  %v1335 = vpop.f32.mrf.mxu0
  %v1336 = vadd.f32 0.0, %v1335
  %v1337 = vpop.f32.mrf.mxu0
  %v1338 = vpop.f32.mrf.mxu0
  %v1339 = vadd.f32 0.0, %v1338
  %v1340 = vpop.f32.mrf.mxu0
  %1341 = vdwg.mxu0
  %v1342 = vadd.f32 %v1328, %v1331
  %v1343 = vadd.f32 %v1342, %v1336
  %v1344 = vadd.f32 %v1343, %v1339
  %v1345 = vrot.slane %v1344, 4
  %v1346 = vadd.f32 %v1344, %v1345
  %v1347 = vrot.slane %v1346, 2
  %v1348 = vadd.f32 %v1346, %v1347
  %v1349 = vrot.slane %v1348, 1
  %v1350 = vadd.f32 %v1348, %v1349
  %1351 = vmatprep.subr.mxu0 0.0
  %1352 = vmatpush1.msra.mxu0 %v383
  %1353 = vmatprep.subr.mxu0 0.0
  %1354 = vmatpush1.msra.mxu0 %v382
  %1355 = vmatprep.subr.mxu0 0.0
  %1356 = vmatpush1.msra.mxu0 %v381
  %1357 = vmatprep.subr.mxu0 0.0
  %1358 = vmatpush1.msra.mxu0 %v380
  %1359 = vmatprep.subr.mxu0 0.0
  %1360 = vmatpush1.msra.mxu0 %v379
  %1361 = vmatprep.subr.mxu0 0.0
  %1362 = vmatpush1.msra.mxu0 %v378
  %1363 = vmatprep.subr.mxu0 0.0
  %1364 = vmatpush1.msra.mxu0 %v377
  %1365 = vmatprep.subr.mxu0 0.0
  %1366 = vmatpush1.msra.mxu0 %v376
  %1367 = vmatprep.subr.mxu0 0.0
  %1368 = vmatpush1.msra.mxu0 %v375
  %1369 = vmatprep.subr.mxu0 0.0
  %1370 = vmatpush1.msra.mxu0 %v374
  %1371 = vmatprep.subr.mxu0 0.0
  %1372 = vmatpush1.msra.mxu0 %v373
  %1373 = vmatprep.subr.mxu0 0.0
  %1374 = vmatpush1.msra.mxu0 %v372
  %1375 = vmatprep.subr.mxu0 0.0
  %1376 = vmatpush1.msra.mxu0 %v371
  %1377 = vmatprep.subr.mxu0 0.0
  %1378 = vmatpush1.msra.mxu0 %v370
  %1379 = vmatprep.subr.mxu0 0.0
  %1380 = vmatpush1.msra.mxu0 %v369
  %1381 = vmatprep.subr.mxu0 0.0
  %1382 = vmatpush1.msra.mxu0 %v368
  %1383 = vmatprep.subr.mxu0 0.0
  %1384 = vmatpush2.msra.mxu0 0.0
  %1385 = vmatprep.subr.mxu0 0.0
  %1386 = vmatpush2.msra.mxu0 0.0
  %1387 = vmatprep.subr.mxu0 0.0
  %1388 = vmatpush2.msra.mxu0 0.0
  %1389 = vmatprep.subr.mxu0 0.0
  %1390 = vmatpush2.msra.mxu0 0.0
  %1391 = vmatprep.subr.mxu0 0.0
  %1392 = vmatpush2.msra.mxu0 0.0
  %1393 = vmatprep.subr.mxu0 0.0
  %1394 = vmatpush2.msra.mxu0 0.0
  %1395 = vmatprep.subr.mxu0 0.0
  %1396 = vmatpush2.msra.mxu0 0.0
  %1397 = vmatprep.subr.mxu0 0.0
  %1398 = vmatpush2.msra.mxu0 0.0
  %1399 = vmatprep.subr.mxu0 0.0
  %1400 = vmatpush2.msra.mxu0 0.0
  %1401 = vmatprep.subr.mxu0 0.0
  %1402 = vmatpush2.msra.mxu0 0.0
  %1403 = vmatprep.subr.mxu0 0.0
  %1404 = vmatpush2.msra.mxu0 0.0
  %1405 = vmatprep.subr.mxu0 0.0
  %1406 = vmatpush2.msra.mxu0 0.0
  %1407 = vmatprep.subr.mxu0 0.0
  %1408 = vmatpush2.msra.mxu0 0.0
  %1409 = vmatprep.subr.mxu0 0.0
  %1410 = vmatpush2.msra.mxu0 0.0
  %1411 = vmatprep.subr.mxu0 0.0
  %1412 = vmatpush2.msra.mxu0 0.0
  %1413 = vmatprep.subr.mxu0 0.0
  %1414 = vmatpush2.msra.mxu0 0.0
  %1415 = vmatprep.mubr.f32.mxu0 0.0
  %1416 = vmatmul.mubr.f32.gmra.mxu0 %v1350
  %v1417 = vpop.f32.mrf.mxu0
  %v1418 = vadd.f32 0.0, %v1417
  %v1419 = vpop.f32.mrf.mxu0
  %1420 = vdwg.mxu0
  %v1421 = vmul.f32 %v1418, 0.001953125
  %v1422 = vlaneseq
  %v1423 = vshrl.u32 %v1422, 7
  %v1424 = vsub.s32 0, %v1423
  %v1425 = vrot.slane %v1421, %v1424
  %v1426 = vsub.f32 %v1328, %v1425
  %v1427 = vsub.f32 %v1331, %v1425
  %v1428 = vsub.f32 %v1336, %v1425
  %v1429 = vsub.f32 %v1339, %v1425
  %v1430 = vmul.f32 %v1426, %v1426
  %v1431 = vmul.f32 %v1427, %v1427
  %v1432 = vmul.f32 %v1428, %v1428
  %v1433 = vmul.f32 %v1429, %v1429
  %v1434 = vadd.f32 %v1430, %v1431
  %v1435 = vadd.f32 %v1434, %v1432
  %v1436 = vadd.f32 %v1435, %v1433
  %v1437 = vrot.slane %v1436, 4
  %v1438 = vadd.f32 %v1436, %v1437
  %v1439 = vrot.slane %v1438, 2
  %v1440 = vadd.f32 %v1438, %v1439
  %v1441 = vrot.slane %v1440, 1
  %v1442 = vadd.f32 %v1440, %v1441
  %1443 = vmatprep.subr.mxu0 0.0
  %1444 = vmatpush1.msra.mxu0 %v383
  %1445 = vmatprep.subr.mxu0 0.0
  %1446 = vmatpush1.msra.mxu0 %v382
  %1447 = vmatprep.subr.mxu0 0.0
  %1448 = vmatpush1.msra.mxu0 %v381
  %1449 = vmatprep.subr.mxu0 0.0
  %1450 = vmatpush1.msra.mxu0 %v380
  %1451 = vmatprep.subr.mxu0 0.0
  %1452 = vmatpush1.msra.mxu0 %v379
  %1453 = vmatprep.subr.mxu0 0.0
  %1454 = vmatpush1.msra.mxu0 %v378
  %1455 = vmatprep.subr.mxu0 0.0
  %1456 = vmatpush1.msra.mxu0 %v377
  %1457 = vmatprep.subr.mxu0 0.0
  %1458 = vmatpush1.msra.mxu0 %v376
  %1459 = vmatprep.subr.mxu0 0.0
  %1460 = vmatpush1.msra.mxu0 %v375
  %1461 = vmatprep.subr.mxu0 0.0
  %1462 = vmatpush1.msra.mxu0 %v374
  %1463 = vmatprep.subr.mxu0 0.0
  %1464 = vmatpush1.msra.mxu0 %v373
  %1465 = vmatprep.subr.mxu0 0.0
  %1466 = vmatpush1.msra.mxu0 %v372
  %1467 = vmatprep.subr.mxu0 0.0
  %1468 = vmatpush1.msra.mxu0 %v371
  %1469 = vmatprep.subr.mxu0 0.0
  %1470 = vmatpush1.msra.mxu0 %v370
  %1471 = vmatprep.subr.mxu0 0.0
  %1472 = vmatpush1.msra.mxu0 %v369
  %1473 = vmatprep.subr.mxu0 0.0
  %1474 = vmatpush1.msra.mxu0 %v368
  %1475 = vmatprep.subr.mxu0 0.0
  %1476 = vmatpush2.msra.mxu0 0.0
  %1477 = vmatprep.subr.mxu0 0.0
  %1478 = vmatpush2.msra.mxu0 0.0
  %1479 = vmatprep.subr.mxu0 0.0
  %1480 = vmatpush2.msra.mxu0 0.0
  %1481 = vmatprep.subr.mxu0 0.0
  %1482 = vmatpush2.msra.mxu0 0.0
  %1483 = vmatprep.subr.mxu0 0.0
  %1484 = vmatpush2.msra.mxu0 0.0
  %1485 = vmatprep.subr.mxu0 0.0
  %1486 = vmatpush2.msra.mxu0 0.0
  %1487 = vmatprep.subr.mxu0 0.0
  %1488 = vmatpush2.msra.mxu0 0.0
  %1489 = vmatprep.subr.mxu0 0.0
  %1490 = vmatpush2.msra.mxu0 0.0
  %1491 = vmatprep.subr.mxu0 0.0
  %1492 = vmatpush2.msra.mxu0 0.0
  %1493 = vmatprep.subr.mxu0 0.0
  %1494 = vmatpush2.msra.mxu0 0.0
  %1495 = vmatprep.subr.mxu0 0.0
  %1496 = vmatpush2.msra.mxu0 0.0
  %1497 = vmatprep.subr.mxu0 0.0
  %1498 = vmatpush2.msra.mxu0 0.0
  %1499 = vmatprep.subr.mxu0 0.0
  %1500 = vmatpush2.msra.mxu0 0.0
  %1501 = vmatprep.subr.mxu0 0.0
  %1502 = vmatpush2.msra.mxu0 0.0
  %1503 = vmatprep.subr.mxu0 0.0
  %1504 = vmatpush2.msra.mxu0 0.0
  %1505 = vmatprep.subr.mxu0 0.0
  %1506 = vmatpush2.msra.mxu0 0.0
  %1507 = vmatprep.mubr.f32.mxu0 0.0
  %1508 = vmatmul.mubr.f32.gmra.mxu0 %v1442
  %v1509 = vpop.f32.mrf.mxu0
  %v1510 = vadd.f32 0.0, %v1509
  %v1511 = vpop.f32.mrf.mxu0
  %1512 = vdwg.mxu0
  %v1513 = vmul.f32 %v1510, 0.001953125
  %v1514 = vadd.f32 %v1513, 0.001
  %v1515 = vrsqrt.pop %v1514
  %v1516 = vld [vmem:[%s3] sm:$0x1]
  %v1517 = vmul.f32 %v1515, %v1516
  %v1518 = vlaneseq
  %v1519 = vshrl.u32 %v1518, 7
  %v1520 = vsub.s32 0, %v1519
  %v1521 = vrot.slane %v1517, %v1520
  %v1522 = vmul.f32 %v1426, %v1521
  %v1523 = vmul.f32 %v1427, %v1521
  %v1524 = vmul.f32 %v1428, %v1521
  %v1525 = vmul.f32 %v1429, %v1521
  %v1526 = vld [vmem:[%s4] sm:$0x1]
  %v1528 = vlaneseq
  %v1529 = vshrl.u32 %v1528, 7
  %v1530 = vsub.s32 0, %v1529
  %v1531 = vrot.slane %v1526, %v1530
  %v1533 = vadd.f32 %v1522, %v1531
  %v1534 = vadd.f32 %v1523, %v1531
  %v1535 = vadd.f32 %v1524, %v1531
  %v1536 = vadd.f32 %v1525, %v1531
  %v1537 = vmax.f32 %v1533, 0.0
  %v1538 = vmax.f32 %v1534, 0.0
  %v1539 = vmax.f32 %v1535, 0.0
  %v1540 = vmax.f32 %v1536, 0.0
  %v1541 = vld [vmem:[%s5] sm:$0xff]
  %v1542 = vld [vmem:[%s5 + $0x8] sm:$0x1]
  %v1547 = vrot.slane %v1537, 7
  %v1548 = vrot.slane %v1538, 7
  %v1549 = vsel %vm967, %v1547, %v1548
  %v1550 = vrot.slane %v1539, 7
  %v1551 = vsel %vm967, %v1548, %v1550
  %v1552 = vrot.slane %v1540, 7
  %v1553 = vsel %vm967, %v1550, %v1552
  %v1558 = vsel %vm967, 0.0, %v1547
  %v1559 = vsel %vm984, %v1558, 0.0
  %v1560 = vsel %vm985, %v1549, 0.0
  %v1561 = vsel %vm986, %v1551, 0.0
  %v1562 = vsel %vm987, %v1553, 0.0
  %1567 = vrot.lane.b32.xlu0 %v1559, 8
  %v1568 = vpop.permute.xlu0 %1567
  %1569 = vrot.lane.b32.xlu0 %v1560, 8
  %v1570 = vpop.permute.xlu0 %1569
  %1571 = vrot.lane.b32.xlu0 %v1561, 8
  %v1572 = vpop.permute.xlu0 %1571
  %1573 = vrot.lane.b32.xlu0 %v1562, 8
  %v1574 = vpop.permute.xlu0 %1573
  %v1579 = vsel %vm1008, 0.0, %v1568
  %v1580 = vsel %vm1008, 0.0, %v1570
  %v1581 = vsel %vm1008, 0.0, %v1572
  %v1582 = vsel %vm1008, 0.0, %v1574
  %v1583 = vlaneseq
  %v1584 = vshrl.u32 %v1583, 7
  %v1585 = vsub.s32 0, %v1584
  %v1586 = vrot.slane %v1541, %v1585
  %v1587 = vmul.f32 %v1579, %v1586
  %v1588 = vmul.f32 %v1580, %v1586
  %v1589 = vmul.f32 %v1581, %v1586
  %v1590 = vmul.f32 %v1582, %v1586
  %v1591 = vlaneseq
  %v1592 = vshrl.u32 %v1591, 7
  %v1593 = vsub.s32 1, %v1592
  %v1594 = vrot.slane %v1541, %v1593
  %v1595 = vmul.f32 %v1559, %v1594
  %v1596 = vmul.f32 %v1560, %v1594
  %v1597 = vmul.f32 %v1561, %v1594
  %v1598 = vmul.f32 %v1562, %v1594
  %v1599 = vadd.f32 %v1587, %v1595
  %v1600 = vadd.f32 %v1588, %v1596
  %v1601 = vadd.f32 %v1589, %v1597
  %v1602 = vadd.f32 %v1590, %v1598
  %1603 = vrot.lane.b32.xlu0 %v1559, 120
  %v1604 = vpop.permute.xlu0 %1603
  %1605 = vrot.lane.b32.xlu0 %v1560, 120
  %v1606 = vpop.permute.xlu0 %1605
  %1607 = vrot.lane.b32.xlu0 %v1561, 120
  %v1608 = vpop.permute.xlu0 %1607
  %1609 = vrot.lane.b32.xlu0 %v1562, 120
  %v1610 = vpop.permute.xlu0 %1609
  %v1615 = vsel %vm1045, %v1604, 0.0
  %v1616 = vsel %vm1045, %v1606, 0.0
  %v1617 = vsel %vm1045, %v1608, 0.0
  %v1618 = vsel %vm1045, %v1610, 0.0
  %v1619 = vlaneseq
  %v1620 = vshrl.u32 %v1619, 7
  %v1621 = vsub.s32 2, %v1620
  %v1622 = vrot.slane %v1541, %v1621
  %v1623 = vmul.f32 %v1615, %v1622
  %v1624 = vmul.f32 %v1616, %v1622
  %v1625 = vmul.f32 %v1617, %v1622
  %v1626 = vmul.f32 %v1618, %v1622
  %v1627 = vadd.f32 %v1599, %v1623
  %v1628 = vadd.f32 %v1600, %v1624
  %v1629 = vadd.f32 %v1601, %v1625
  %v1630 = vadd.f32 %v1602, %v1626
  %1631 = vrot.lane.b32.xlu0 %v1537, 8
  %v1632 = vpop.permute.xlu0 %1631
  %1633 = vrot.lane.b32.xlu0 %v1538, 8
  %v1634 = vpop.permute.xlu0 %1633
  %1635 = vrot.lane.b32.xlu0 %v1539, 8
  %v1636 = vpop.permute.xlu0 %1635
  %1637 = vrot.lane.b32.xlu0 %v1540, 8
  %v1638 = vpop.permute.xlu0 %1637
  %v1643 = vsel %vm1008, 0.0, %v1632
  %v1644 = vsel %vm1008, 0.0, %v1634
  %v1645 = vsel %vm1008, 0.0, %v1636
  %v1646 = vsel %vm1008, 0.0, %v1638
  %v1647 = vlaneseq
  %v1648 = vshrl.u32 %v1647, 7
  %v1649 = vsub.s32 3, %v1648
  %v1650 = vrot.slane %v1541, %v1649
  %v1651 = vmul.f32 %v1643, %v1650
  %v1652 = vmul.f32 %v1644, %v1650
  %v1653 = vmul.f32 %v1645, %v1650
  %v1654 = vmul.f32 %v1646, %v1650
  %v1655 = vadd.f32 %v1627, %v1651
  %v1656 = vadd.f32 %v1628, %v1652
  %v1657 = vadd.f32 %v1629, %v1653
  %v1658 = vadd.f32 %v1630, %v1654
  %v1659 = vlaneseq
  %v1660 = vshrl.u32 %v1659, 7
  %v1661 = vsub.s32 4, %v1660
  %v1662 = vrot.slane %v1541, %v1661
  %v1663 = vmul.f32 %v1537, %v1662
  %v1664 = vmul.f32 %v1538, %v1662
  %v1665 = vmul.f32 %v1539, %v1662
  %v1666 = vmul.f32 %v1540, %v1662
  %v1667 = vadd.f32 %v1655, %v1663
  %v1668 = vadd.f32 %v1656, %v1664
  %v1669 = vadd.f32 %v1657, %v1665
  %v1670 = vadd.f32 %v1658, %v1666
  %1671 = vrot.lane.b32.xlu0 %v1537, 120
  %v1672 = vpop.permute.xlu0 %1671
  %1673 = vrot.lane.b32.xlu0 %v1538, 120
  %v1674 = vpop.permute.xlu0 %1673
  %1675 = vrot.lane.b32.xlu0 %v1539, 120
  %v1676 = vpop.permute.xlu0 %1675
  %1677 = vrot.lane.b32.xlu0 %v1540, 120
  %v1678 = vpop.permute.xlu0 %1677
  %v1683 = vsel %vm1045, %v1672, 0.0
  %v1684 = vsel %vm1045, %v1674, 0.0
  %v1685 = vsel %vm1045, %v1676, 0.0
  %v1686 = vsel %vm1045, %v1678, 0.0
  %v1687 = vlaneseq
  %v1688 = vshrl.u32 %v1687, 7
  %v1689 = vsub.s32 5, %v1688
  %v1690 = vrot.slane %v1541, %v1689
  %v1691 = vmul.f32 %v1683, %v1690
  %v1692 = vmul.f32 %v1684, %v1690
  %v1693 = vmul.f32 %v1685, %v1690
  %v1694 = vmul.f32 %v1686, %v1690
  %v1695 = vadd.f32 %v1667, %v1691
  %v1696 = vadd.f32 %v1668, %v1692
  %v1697 = vadd.f32 %v1669, %v1693
  %v1698 = vadd.f32 %v1670, %v1694
  %v1699 = vrot.slane %v1537, 1
  %v1700 = vrot.slane %v1538, 1
  %v1701 = vsel %vm1130, %v1699, %v1700
  %v1702 = vrot.slane %v1539, 1
  %v1703 = vsel %vm1130, %v1700, %v1702
  %v1704 = vrot.slane %v1540, 1
  %v1705 = vsel %vm1130, %v1702, %v1704
  %v1710 = vsel %vm1130, %v1704, 0.0
  %v1711 = vsel %vm1147, %v1701, 0.0
  %v1712 = vsel %vm1148, %v1703, 0.0
  %v1713 = vsel %vm1149, %v1705, 0.0
  %v1714 = vsel %vm1150, %v1710, 0.0
  %1719 = vrot.lane.b32.xlu0 %v1711, 8
  %v1720 = vpop.permute.xlu0 %1719
  %1721 = vrot.lane.b32.xlu0 %v1712, 8
  %v1722 = vpop.permute.xlu0 %1721
  %1723 = vrot.lane.b32.xlu0 %v1713, 8
  %v1724 = vpop.permute.xlu0 %1723
  %1725 = vrot.lane.b32.xlu0 %v1714, 8
  %v1726 = vpop.permute.xlu0 %1725
  %v1731 = vsel %vm1008, 0.0, %v1720
  %v1732 = vsel %vm1008, 0.0, %v1722
  %v1733 = vsel %vm1008, 0.0, %v1724
  %v1734 = vsel %vm1008, 0.0, %v1726
  %v1735 = vlaneseq
  %v1736 = vshrl.u32 %v1735, 7
  %v1737 = vsub.s32 6, %v1736
  %v1738 = vrot.slane %v1541, %v1737
  %v1739 = vmul.f32 %v1731, %v1738
  %v1740 = vmul.f32 %v1732, %v1738
  %v1741 = vmul.f32 %v1733, %v1738
  %v1742 = vmul.f32 %v1734, %v1738
  %v1743 = vadd.f32 %v1695, %v1739
  %v1744 = vadd.f32 %v1696, %v1740
  %v1745 = vadd.f32 %v1697, %v1741
  %v1746 = vadd.f32 %v1698, %v1742
  %v1747 = vlaneseq
  %v1748 = vshrl.u32 %v1747, 7
  %v1749 = vsub.s32 7, %v1748
  %v1750 = vrot.slane %v1541, %v1749
  %v1751 = vmul.f32 %v1711, %v1750
  %v1752 = vmul.f32 %v1712, %v1750
  %v1753 = vmul.f32 %v1713, %v1750
  %v1754 = vmul.f32 %v1714, %v1750
  %v1755 = vadd.f32 %v1743, %v1751
  %v1756 = vadd.f32 %v1744, %v1752
  %v1757 = vadd.f32 %v1745, %v1753
  %v1758 = vadd.f32 %v1746, %v1754
  %1759 = vrot.lane.b32.xlu0 %v1711, 120
  %v1760 = vpop.permute.xlu0 %1759
  %1761 = vrot.lane.b32.xlu0 %v1712, 120
  %v1762 = vpop.permute.xlu0 %1761
  %1763 = vrot.lane.b32.xlu0 %v1713, 120
  %v1764 = vpop.permute.xlu0 %1763
  %1765 = vrot.lane.b32.xlu0 %v1714, 120
  %v1766 = vpop.permute.xlu0 %1765
  %v1771 = vsel %vm1045, %v1760, 0.0
  %v1772 = vsel %vm1045, %v1762, 0.0
  %v1773 = vsel %vm1045, %v1764, 0.0
  %v1774 = vsel %vm1045, %v1766, 0.0
  %v1775 = vlaneseq
  %v1776 = vshrl.u32 %v1775, 7
  %v1777 = vsub.s32 0, %v1776
  %v1778 = vrot.slane %v1542, %v1777
  %v1779 = vmul.f32 %v1771, %v1778
  %v1780 = vmul.f32 %v1772, %v1778
  %v1781 = vmul.f32 %v1773, %v1778
  %v1782 = vmul.f32 %v1774, %v1778
  %v1783 = vadd.f32 %v1755, %v1779
  %v1784 = vadd.f32 %v1756, %v1780
  %v1785 = vadd.f32 %v1757, %v1781
  %v1786 = vadd.f32 %v1758, %v1782
  %v1787 = vpack.c.bf16 %v1784, %v1783
  %v1788 = vpack.c.bf16 %v1786, %v1785
  %v1789 = vld [vmem:[%s6] sm:$0xff]
  %v1790 = vld [vmem:[%s6 + $0x8] sm:$0xff]
  %v1791 = vld [vmem:[%s6 + $0x10] sm:$0xff]
  %v1792 = vld [vmem:[%s6 + $0x18] sm:$0xff]
  %v1793 = vld [vmem:[%s6 + $0x20] sm:$0xff]
  %v1794 = vld [vmem:[%s6 + $0x28] sm:$0xff]
  %v1795 = vld [vmem:[%s6 + $0x30] sm:$0xff]
  %v1796 = vld [vmem:[%s6 + $0x38] sm:$0xff]
  %v1797 = vld [vmem:[%s6 + $0x40] sm:$0xff]
  %v1798 = vld [vmem:[%s6 + $0x48] sm:$0xff]
  %v1799 = vld [vmem:[%s6 + $0x50] sm:$0xff]
  %v1800 = vld [vmem:[%s6 + $0x58] sm:$0xff]
  %v1801 = vld [vmem:[%s6 + $0x60] sm:$0xff]
  %v1802 = vld [vmem:[%s6 + $0x68] sm:$0xff]
  %v1803 = vld [vmem:[%s6 + $0x70] sm:$0xff]
  %v1804 = vld [vmem:[%s6 + $0x78] sm:$0xff]
  %v1821 = vunpack.c.l.b16 %v1789
  %v1822 = vunpack.c.h.b16 %v1789
  %v1823 = vunpack.c.l.b16 %v1790
  %v1824 = vunpack.c.h.b16 %v1790
  %v1825 = vunpack.c.l.b16 %v1791
  %v1826 = vunpack.c.h.b16 %v1791
  %v1827 = vunpack.c.l.b16 %v1792
  %v1828 = vunpack.c.h.b16 %v1792
  %v1829 = vunpack.c.l.b16 %v1793
  %v1830 = vunpack.c.h.b16 %v1793
  %v1831 = vunpack.c.l.b16 %v1794
  %v1832 = vunpack.c.h.b16 %v1794
  %v1833 = vunpack.c.l.b16 %v1795
  %v1834 = vunpack.c.h.b16 %v1795
  %v1835 = vunpack.c.l.b16 %v1796
  %v1836 = vunpack.c.h.b16 %v1796
  %v1837 = vunpack.c.l.b16 %v1797
  %v1838 = vunpack.c.h.b16 %v1797
  %v1839 = vunpack.c.l.b16 %v1798
  %v1840 = vunpack.c.h.b16 %v1798
  %v1841 = vunpack.c.l.b16 %v1799
  %v1842 = vunpack.c.h.b16 %v1799
  %v1843 = vunpack.c.l.b16 %v1800
  %v1844 = vunpack.c.h.b16 %v1800
  %v1845 = vunpack.c.l.b16 %v1801
  %v1846 = vunpack.c.h.b16 %v1801
  %v1847 = vunpack.c.l.b16 %v1802
  %v1848 = vunpack.c.h.b16 %v1802
  %v1849 = vunpack.c.l.b16 %v1803
  %v1850 = vunpack.c.h.b16 %v1803
  %v1851 = vunpack.c.l.b16 %v1804
  %v1852 = vunpack.c.h.b16 %v1804
  %v1853 = vpack.c.b16 %v1823, %v1821
  %v1854 = vpack.c.b16 %v1824, %v1822
  %v1855 = vpack.c.b16 %v1827, %v1825
  %v1856 = vpack.c.b16 %v1828, %v1826
  %v1857 = vpack.c.b16 %v1831, %v1829
  %v1858 = vpack.c.b16 %v1832, %v1830
  %v1859 = vpack.c.b16 %v1835, %v1833
  %v1860 = vpack.c.b16 %v1836, %v1834
  %v1861 = vpack.c.b16 %v1839, %v1837
  %v1862 = vpack.c.b16 %v1840, %v1838
  %v1863 = vpack.c.b16 %v1843, %v1841
  %v1864 = vpack.c.b16 %v1844, %v1842
  %v1865 = vpack.c.b16 %v1847, %v1845
  %v1866 = vpack.c.b16 %v1848, %v1846
  %v1867 = vpack.c.b16 %v1851, %v1849
  %v1868 = vpack.c.b16 %v1852, %v1850
  %1885 = vmatprep.subr.bf16.mxu0 %v1868
  %1886 = vmatpush1.bf16.msra.mxu0 %v1867
  %1887 = vmatprep.subr.bf16.mxu0 %v1866
  %1888 = vmatpush1.bf16.msra.mxu0 %v1865
  %1889 = vmatprep.subr.bf16.mxu0 %v1864
  %1890 = vmatpush1.bf16.msra.mxu0 %v1863
  %1891 = vmatprep.subr.bf16.mxu0 %v1862
  %1892 = vmatpush1.bf16.msra.mxu0 %v1861
  %1893 = vmatprep.subr.bf16.mxu0 %v1860
  %1894 = vmatpush1.bf16.msra.mxu0 %v1859
  %1895 = vmatprep.subr.bf16.mxu0 %v1858
  %1896 = vmatpush1.bf16.msra.mxu0 %v1857
  %1897 = vmatprep.subr.bf16.mxu0 %v1856
  %1898 = vmatpush1.bf16.msra.mxu0 %v1855
  %1899 = vmatprep.subr.bf16.mxu0 %v1854
  %1900 = vmatpush1.bf16.msra.mxu0 %v1853
  %1901 = vmatprep.subr.bf16.mxu0 0
  %1902 = vmatpush2.bf16.msra.mxu0 0
  %1903 = vmatprep.subr.bf16.mxu0 0
  %1904 = vmatpush2.bf16.msra.mxu0 0
  %1905 = vmatprep.subr.bf16.mxu0 0
  %1906 = vmatpush2.bf16.msra.mxu0 0
  %1907 = vmatprep.subr.bf16.mxu0 0
  %1908 = vmatpush2.bf16.msra.mxu0 0
  %1909 = vmatprep.subr.bf16.mxu0 0
  %1910 = vmatpush2.bf16.msra.mxu0 0
  %1911 = vmatprep.subr.bf16.mxu0 0
  %1912 = vmatpush2.bf16.msra.mxu0 0
  %1913 = vmatprep.subr.bf16.mxu0 0
  %1914 = vmatpush2.bf16.msra.mxu0 0
  %1915 = vmatprep.subr.bf16.mxu0 0
  %1916 = vmatpush2.bf16.msra.mxu0 0
  %1917 = vmatprep.mubr.bf16.mxu0 0
  %1918 = vmatmul.mubr.bf16.gmra.mxu0 %v1787
  %v1919 = vpop.f32.mrf.mxu0
  %v1920 = vadd.f32 0.0, %v1919
  %v1921 = vpop.f32.mrf.mxu0
  %v1922 = vadd.f32 0.0, %v1921
  %v1923 = vpop.f32.mrf.mxu0
  %v1924 = vadd.f32 0.0, %v1923
  %v1925 = vpop.f32.mrf.mxu0
  %v1926 = vadd.f32 0.0, %v1925
  %1927 = vmatprep.mubr.bf16.mxu0 0
  %1928 = vmatmul.mubr.bf16.gmra.mxu0 %v1788
  %v1929 = vpop.f32.mrf.mxu0
  %v1930 = vadd.f32 0.0, %v1929
  %v1931 = vpop.f32.mrf.mxu0
  %v1932 = vadd.f32 0.0, %v1931
  %v1933 = vpop.f32.mrf.mxu0
  %v1934 = vadd.f32 0.0, %v1933
  %v1935 = vpop.f32.mrf.mxu0
  %v1936 = vadd.f32 0.0, %v1935
  %1937 = vdwg.mxu0
  %v1938 = vadd.f32 %v1920, %v1924
  %v1939 = vadd.f32 %v1938, %v1930
  %v1940 = vadd.f32 %v1939, %v1934
  %v1941 = vrot.slane %v1940, 4
  %v1942 = vadd.f32 %v1940, %v1941
  %v1943 = vrot.slane %v1942, 2
  %v1944 = vadd.f32 %v1942, %v1943
  %v1945 = vrot.slane %v1944, 1
  %v1946 = vadd.f32 %v1944, %v1945
  %v1947 = vadd.f32 %v1922, %v1926
  %v1948 = vadd.f32 %v1947, %v1932
  %v1949 = vadd.f32 %v1948, %v1936
  %v1950 = vrot.slane %v1949, 4
  %v1951 = vadd.f32 %v1949, %v1950
  %v1952 = vrot.slane %v1951, 2
  %v1953 = vadd.f32 %v1951, %v1952
  %v1954 = vrot.slane %v1953, 1
  %v1955 = vadd.f32 %v1953, %v1954
  %1956 = vmatprep.subr.mxu0 %v920
  %1957 = vmatpush1.msra.mxu0 %v919
  %1958 = vmatprep.subr.mxu0 %v918
  %1959 = vmatpush1.msra.mxu0 %v917
  %1960 = vmatprep.subr.mxu0 %v916
  %1961 = vmatpush1.msra.mxu0 %v915
  %1962 = vmatprep.subr.mxu0 %v914
  %1963 = vmatpush1.msra.mxu0 %v913
  %1964 = vmatprep.subr.mxu0 %v912
  %1965 = vmatpush1.msra.mxu0 %v911
  %1966 = vmatprep.subr.mxu0 %v910
  %1967 = vmatpush1.msra.mxu0 %v909
  %1968 = vmatprep.subr.mxu0 %v908
  %1969 = vmatpush1.msra.mxu0 %v907
  %1970 = vmatprep.subr.mxu0 %v906
  %1971 = vmatpush1.msra.mxu0 %v905
  %1972 = vmatprep.subr.mxu0 %v904
  %1973 = vmatpush1.msra.mxu0 %v903
  %1974 = vmatprep.subr.mxu0 %v902
  %1975 = vmatpush1.msra.mxu0 %v901
  %1976 = vmatprep.subr.mxu0 %v900
  %1977 = vmatpush1.msra.mxu0 %v899
  %1978 = vmatprep.subr.mxu0 %v898
  %1979 = vmatpush1.msra.mxu0 %v897
  %1980 = vmatprep.subr.mxu0 %v896
  %1981 = vmatpush1.msra.mxu0 %v895
  %1982 = vmatprep.subr.mxu0 %v894
  %1983 = vmatpush1.msra.mxu0 %v893
  %1984 = vmatprep.subr.mxu0 %v892
  %1985 = vmatpush1.msra.mxu0 %v891
  %1986 = vmatprep.subr.mxu0 %v890
  %1987 = vmatpush1.msra.mxu0 %v889
  %1988 = vmatprep.subr.mxu0 %v952
  %1989 = vmatpush2.msra.mxu0 %v951
  %1990 = vmatprep.subr.mxu0 %v950
  %1991 = vmatpush2.msra.mxu0 %v949
  %1992 = vmatprep.subr.mxu0 %v948
  %1993 = vmatpush2.msra.mxu0 %v947
  %1994 = vmatprep.subr.mxu0 %v946
  %1995 = vmatpush2.msra.mxu0 %v945
  %1996 = vmatprep.subr.mxu0 %v944
  %1997 = vmatpush2.msra.mxu0 %v943
  %1998 = vmatprep.subr.mxu0 %v942
  %1999 = vmatpush2.msra.mxu0 %v941
  %2000 = vmatprep.subr.mxu0 %v940
  %2001 = vmatpush2.msra.mxu0 %v939
  %2002 = vmatprep.subr.mxu0 %v938
  %2003 = vmatpush2.msra.mxu0 %v937
  %2004 = vmatprep.subr.mxu0 %v936
  %2005 = vmatpush2.msra.mxu0 %v935
  %2006 = vmatprep.subr.mxu0 %v934
  %2007 = vmatpush2.msra.mxu0 %v933
  %2008 = vmatprep.subr.mxu0 %v932
  %2009 = vmatpush2.msra.mxu0 %v931
  %2010 = vmatprep.subr.mxu0 %v930
  %2011 = vmatpush2.msra.mxu0 %v929
  %2012 = vmatprep.subr.mxu0 %v928
  %2013 = vmatpush2.msra.mxu0 %v927
  %2014 = vmatprep.subr.mxu0 %v926
  %2015 = vmatpush2.msra.mxu0 %v925
  %2016 = vmatprep.subr.mxu0 %v924
  %2017 = vmatpush2.msra.mxu0 %v923
  %2018 = vmatprep.subr.mxu0 %v922
  %2019 = vmatpush2.msra.mxu0 %v921
  %2020 = vmatprep.mubr.f32.mxu0 %v1955
  %2021 = vmatmul.mubr.f32.gmra.mxu0 %v1946
  %v2022 = vpop.f32.mrf.mxu0
  %v2023 = vadd.f32 0.0, %v2022
  %v2024 = vpop.f32.mrf.mxu0
  %v2025 = vadd.f32 0.0, %v2024
  %2026 = vdwg.mxu0
  %v2027 = vmul.f32 %v2023, 0.001953125
  %v2028 = vmul.f32 %v2025, 0.001953125
  %v2029 = vlaneseq
  %v2030 = vshrl.u32 %v2029, 7
  %v2031 = vsub.s32 0, %v2030
  %v2032 = vrot.slane %v2027, %v2031
  %v2033 = vlaneseq
  %v2034 = vshrl.u32 %v2033, 7
  %v2035 = vsub.s32 0, %v2034
  %v2036 = vrot.slane %v2028, %v2035
  %v2037 = vsub.f32 %v1920, %v2032
  %v2038 = vsub.f32 %v1922, %v2036
  %v2039 = vsub.f32 %v1924, %v2032
  %v2040 = vsub.f32 %v1926, %v2036
  %v2041 = vsub.f32 %v1930, %v2032
  %v2042 = vsub.f32 %v1932, %v2036
  %v2043 = vsub.f32 %v1934, %v2032
  %v2044 = vsub.f32 %v1936, %v2036
  %v2045 = vmul.f32 %v2037, %v2037
  %v2046 = vmul.f32 %v2038, %v2038
  %v2047 = vmul.f32 %v2039, %v2039
  %v2048 = vmul.f32 %v2040, %v2040
  %v2049 = vmul.f32 %v2041, %v2041
  %v2050 = vmul.f32 %v2042, %v2042
  %v2051 = vmul.f32 %v2043, %v2043
  %v2052 = vmul.f32 %v2044, %v2044
  %v2053 = vadd.f32 %v2045, %v2047
  %v2054 = vadd.f32 %v2053, %v2049
  %v2055 = vadd.f32 %v2054, %v2051
  %v2056 = vrot.slane %v2055, 4
  %v2057 = vadd.f32 %v2055, %v2056
  %v2058 = vrot.slane %v2057, 2
  %v2059 = vadd.f32 %v2057, %v2058
  %v2060 = vrot.slane %v2059, 1
  %v2061 = vadd.f32 %v2059, %v2060
  %v2062 = vadd.f32 %v2046, %v2048
  %v2063 = vadd.f32 %v2062, %v2050
  %v2064 = vadd.f32 %v2063, %v2052
  %v2065 = vrot.slane %v2064, 4
  %v2066 = vadd.f32 %v2064, %v2065
  %v2067 = vrot.slane %v2066, 2
  %v2068 = vadd.f32 %v2066, %v2067
  %v2069 = vrot.slane %v2068, 1
  %v2070 = vadd.f32 %v2068, %v2069
  %2071 = vmatprep.subr.mxu0 %v920
  %2072 = vmatpush1.msra.mxu0 %v919
  %2073 = vmatprep.subr.mxu0 %v918
  %2074 = vmatpush1.msra.mxu0 %v917
  %2075 = vmatprep.subr.mxu0 %v916
  %2076 = vmatpush1.msra.mxu0 %v915
  %2077 = vmatprep.subr.mxu0 %v914
  %2078 = vmatpush1.msra.mxu0 %v913
  %2079 = vmatprep.subr.mxu0 %v912
  %2080 = vmatpush1.msra.mxu0 %v911
  %2081 = vmatprep.subr.mxu0 %v910
  %2082 = vmatpush1.msra.mxu0 %v909
  %2083 = vmatprep.subr.mxu0 %v908
  %2084 = vmatpush1.msra.mxu0 %v907
  %2085 = vmatprep.subr.mxu0 %v906
  %2086 = vmatpush1.msra.mxu0 %v905
  %2087 = vmatprep.subr.mxu0 %v904
  %2088 = vmatpush1.msra.mxu0 %v903
  %2089 = vmatprep.subr.mxu0 %v902
  %2090 = vmatpush1.msra.mxu0 %v901
  %2091 = vmatprep.subr.mxu0 %v900
  %2092 = vmatpush1.msra.mxu0 %v899
  %2093 = vmatprep.subr.mxu0 %v898
  %2094 = vmatpush1.msra.mxu0 %v897
  %2095 = vmatprep.subr.mxu0 %v896
  %2096 = vmatpush1.msra.mxu0 %v895
  %2097 = vmatprep.subr.mxu0 %v894
  %2098 = vmatpush1.msra.mxu0 %v893
  %2099 = vmatprep.subr.mxu0 %v892
  %2100 = vmatpush1.msra.mxu0 %v891
  %2101 = vmatprep.subr.mxu0 %v890
  %2102 = vmatpush1.msra.mxu0 %v889
  %2103 = vmatprep.subr.mxu0 %v952
  %2104 = vmatpush2.msra.mxu0 %v951
  %2105 = vmatprep.subr.mxu0 %v950
  %2106 = vmatpush2.msra.mxu0 %v949
  %2107 = vmatprep.subr.mxu0 %v948
  %2108 = vmatpush2.msra.mxu0 %v947
  %2109 = vmatprep.subr.mxu0 %v946
  %2110 = vmatpush2.msra.mxu0 %v945
  %2111 = vmatprep.subr.mxu0 %v944
  %2112 = vmatpush2.msra.mxu0 %v943
  %2113 = vmatprep.subr.mxu0 %v942
  %2114 = vmatpush2.msra.mxu0 %v941
  %2115 = vmatprep.subr.mxu0 %v940
  %2116 = vmatpush2.msra.mxu0 %v939
  %2117 = vmatprep.subr.mxu0 %v938
  %2118 = vmatpush2.msra.mxu0 %v937
  %2119 = vmatprep.subr.mxu0 %v936
  %2120 = vmatpush2.msra.mxu0 %v935
  %2121 = vmatprep.subr.mxu0 %v934
  %2122 = vmatpush2.msra.mxu0 %v933
  %2123 = vmatprep.subr.mxu0 %v932
  %2124 = vmatpush2.msra.mxu0 %v931
  %2125 = vmatprep.subr.mxu0 %v930
  %2126 = vmatpush2.msra.mxu0 %v929
  %2127 = vmatprep.subr.mxu0 %v928
  %2128 = vmatpush2.msra.mxu0 %v927
  %2129 = vmatprep.subr.mxu0 %v926
  %2130 = vmatpush2.msra.mxu0 %v925
  %2131 = vmatprep.subr.mxu0 %v924
  %2132 = vmatpush2.msra.mxu0 %v923
  %2133 = vmatprep.subr.mxu0 %v922
  %2134 = vmatpush2.msra.mxu0 %v921
  %2135 = vmatprep.mubr.f32.mxu0 %v2070
  %2136 = vmatmul.mubr.f32.gmra.mxu0 %v2061
  %v2137 = vpop.f32.mrf.mxu0
  %v2138 = vadd.f32 0.0, %v2137
  %v2139 = vpop.f32.mrf.mxu0
  %v2140 = vadd.f32 0.0, %v2139
  %2141 = vdwg.mxu0
  %v2142 = vmul.f32 %v2138, 0.001953125
  %v2143 = vmul.f32 %v2140, 0.001953125
  %v2144 = vadd.f32 %v2142, 0.001
  %v2145 = vadd.f32 %v2143, 0.001
  %v2146 = vrsqrt.pop %v2144
  %v2147 = vrsqrt.pop %v2145
  %v2148 = vld [vmem:[%s7] sm:$0x3]
  %v2150 = vlaneseq
  %v2151 = vshrl.u32 %v2150, 7
  %v2152 = vsub.s32 0, %v2151
  %v2153 = vrot.slane %v2148, %v2152
  %v2154 = vlaneseq
  %v2155 = vshrl.u32 %v2154, 7
  %v2156 = vsub.s32 1, %v2155
  %v2157 = vrot.slane %v2148, %v2156
  %v2160 = vmul.f32 %v2146, %v2153
  %v2161 = vmul.f32 %v2147, %v2157
  %v2162 = vlaneseq
  %v2163 = vshrl.u32 %v2162, 7
  %v2164 = vsub.s32 0, %v2163
  %v2165 = vrot.slane %v2160, %v2164
  %v2166 = vlaneseq
  %v2167 = vshrl.u32 %v2166, 7
  %v2168 = vsub.s32 0, %v2167
  %v2169 = vrot.slane %v2161, %v2168
  %v2170 = vmul.f32 %v2037, %v2165
  %v2171 = vmul.f32 %v2038, %v2169
  %v2172 = vmul.f32 %v2039, %v2165
  %v2173 = vmul.f32 %v2040, %v2169
  %v2174 = vmul.f32 %v2041, %v2165
  %v2175 = vmul.f32 %v2042, %v2169
  %v2176 = vmul.f32 %v2043, %v2165
  %v2177 = vmul.f32 %v2044, %v2169
  %v2178 = vld [vmem:[%s8] sm:$0x3]
  %v2180 = vlaneseq
  %v2181 = vshrl.u32 %v2180, 7
  %v2182 = vsub.s32 0, %v2181
  %v2183 = vrot.slane %v2178, %v2182
  %v2184 = vlaneseq
  %v2185 = vshrl.u32 %v2184, 7
  %v2186 = vsub.s32 1, %v2185
  %v2187 = vrot.slane %v2178, %v2186
  %v2190 = vadd.f32 %v2170, %v2183
  %v2191 = vadd.f32 %v2171, %v2187
  %v2192 = vadd.f32 %v2172, %v2183
  %v2193 = vadd.f32 %v2173, %v2187
  %v2194 = vadd.f32 %v2174, %v2183
  %v2195 = vadd.f32 %v2175, %v2187
  %v2196 = vadd.f32 %v2176, %v2183
  %v2197 = vadd.f32 %v2177, %v2187
  %2198 = vst [vmem:[%s9] sm:$0xff] %v2190
  %2199 = vst [vmem:[%s9 + $0x8] sm:$0xff] %v2191
  %2200 = vst [vmem:[%s9 + $0x10] sm:$0xff] %v2192
  %2201 = vst [vmem:[%s9 + $0x18] sm:$0xff] %v2193
  %2202 = vst [vmem:[%s9 + $0x20] sm:$0xff] %v2194
  %2203 = vst [vmem:[%s9 + $0x28] sm:$0xff] %v2195
  %2204 = vst [vmem:[%s9 + $0x30] sm:$0xff] %v2196
  %2205 = vst [vmem:[%s9 + $0x38] sm:$0xff] %v2197
  // Predicated region
  $region38: #{two_separables_forward.1} parent=0 // pred_check
    _
  $region39: #{two_separables_forward.1} parent=0 // pred_check_branch
    %2207 = sbr.rel (0) target = $region41
  $region40: #{two_separables_forward.1} parent=0 // pred_region
    _
  $region41: #{two_separables_forward.1} parent=0 // pred_fallthru
    _
  // Predicated region
  $region42: #{two_separables_forward.1} parent=0 // pred_check
    _
  $region43: #{two_separables_forward.1} parent=0 // pred_check_branch
    %2209 = sbr.rel (0) target = $region45
  $region44: #{two_separables_forward.1} parent=0 // pred_region
    _
  $region45: #{two_separables_forward.1} parent=0 // pred_fallthru
    _

</llo_original>
